<compile_context>
chip_gen: v6e
topology: v6e:2x2x1
jax: 0.10.0
libtpu: 0.0.40
codegen_flags: <defaults>
</compile_context>

<pallas_src>
import math

import jax
import jax.numpy as jnp
from jax.experimental import pallas as pl
from jax.experimental.pallas import tpu as pltpu

_SUBLANE = 8
_LANE = 128


def _make_kernel(x_dim: int):
    small_xdim = x_dim <= 64  # VPU MAC path — cheaper/exacter than a K<=64 MXU pass.

    def kernel(x_ref, w_ref, b_ref, o_ref):
        # x_ref: (tile_n, x_dim)        point tile (native dtype, upcast here)
        # w_ref: (x_dim, feature_dim)   weight-normed W^T pre-scaled by 1/(sigma*sqrt(2))
        # b_ref: (1, feature_dim)       bias pre-scaled by 1/(sigma*sqrt(2))
        x = x_ref[...].astype(jnp.float32)
        w = w_ref[...]
        if small_xdim:
            # Tiny contraction dim: exact-f32 VPU MACs (outer-product broadcasts).
            y = b_ref[...] + x[:, 0:1] * w[0:1, :]
            for k in range(1, x_dim):
                y = y + x[:, k:k + 1] * w[k:k + 1, :]
        else:
            # MXU fallback for wide inputs; kernel is store-bound, DEFAULT precision.
            y = jnp.dot(x, w, preferred_element_type=jnp.float32) + b_ref[...]
        mu = jnp.mean(y, axis=-1, keepdims=True)   # per-row cross-lane reduce (XLU)
        d = y - mu
        # sigma is folded into w/b:  exp(-d^2) == exp(-0.5*(y-mu)^2/sigma^2).
        o_ref[...] = jnp.exp(-(d * d)).astype(o_ref.dtype)  # single lane-dense store

    return kernel


def _choose_tile_and_vmem(N, F, x_dim, out_bytes, requested):
    """Row-tile size + VMEM limit from an explicit per-generation-safe budget."""
    # Per-row VMEM bytes for one grid step:
    #   double-buffered output tile              : 2 * F * out_bytes
    #   double-buffered, 128-lane-padded x tile  : 2 * 128 * 4
    #   in-kernel f32 intermediates (y, d, exp)  : ~3 * F * 4
    per_row = 2 * F * out_bytes + 2 * _LANE * 4 + 3 * F * 4
    budget = 28 << 20  # fits v7x's 64 MiB/TC with headroom; far under v5e/v6e physical
    cap = max(_SUBLANE, (budget // per_row) // _SUBLANE * _SUBLANE)
    tile = cap if requested is None else min(int(requested), cap)
    tile = min(tile, pl.cdiv(N, _SUBLANE) * _SUBLANE)        # never exceed the problem
    tile = max(_SUBLANE, (tile // _SUBLANE) * _SUBLANE)
    # Feed both TensorCores (megacore / v7x) when one tile would otherwise cover all rows.
    if pl.cdiv(N, tile) < 2 and N >= 2048:
        tile = max(_SUBLANE, pl.cdiv(pl.cdiv(N, 2), _SUBLANE) * _SUBLANE)
    # Resident params: sublane-padded W^T and bias rows (tiny), double-buffered.
    param_bytes = 2 * (pl.cdiv(x_dim, _SUBLANE) * _SUBLANE + _SUBLANE) * F * 4
    vmem_limit = min(tile * per_row + param_bytes + (8 << 20), 56 << 20)
    return tile, int(vmem_limit)


class GaussianEncoderPallas:
    """JAX/Pallas port of conerf's GaussianEncoder (forward pass only)."""

    def __init__(self, x_dim, feature_dim, init_range=0.1, sigma=0.1, *, key):
        self.x_dim = int(x_dim)
        self.feature_dim = int(feature_dim)
        self.latent_dim = int(feature_dim)
        self.sigma = float(sigma)
        self.sigma_square = float(sigma) ** 2

        kv, kb = jax.random.split(key)
        # init_func default: nn.init.uniform_(weight, -init_range, init_range)
        v = jax.random.uniform(kv, (feature_dim, x_dim), jnp.float32,
                               minval=-init_range, maxval=init_range)
        # weight_norm(dim=0): g initialized to ||v|| per output row
        g = jnp.sqrt(jnp.sum(v * v, axis=1))
        # default nn.Linear bias init: U(-1/sqrt(fan_in), 1/sqrt(fan_in))
        bound = 1.0 / math.sqrt(x_dim)
        b = jax.random.uniform(kb, (feature_dim,), jnp.float32,
                               minval=-bound, maxval=bound)
        self.v, self.g, self.b = v, g, b

    def scaled_params(self):
        """Weight-norm reparam W = g*v/||v|| with 1/(sigma*sqrt(2)) folded in (tiny, one-time)."""
        norm = jnp.sqrt(jnp.sum(self.v * self.v, axis=1, keepdims=True))
        w = self.g[:, None] * self.v / norm                       # (F, x_dim)
        inv = 1.0 / (self.sigma * math.sqrt(2.0))
        w_t = (w.T * inv).astype(jnp.float32)                     # (x_dim, F)
        b_row = (self.b * inv)[None, :].astype(jnp.float32)       # (1, F)
        return w_t, b_row

    def __call__(self, x, tile_n=None, out_dtype=jnp.float32):
        N, xd = x.shape
        assert xd == self.x_dim
        F = self.feature_dim
        out_bytes = jnp.dtype(out_dtype).itemsize

        tile, vmem_limit = _choose_tile_and_vmem(N, F, xd, out_bytes, tile_n)
        w_t, b_row = self.scaled_params()
        kernel = _make_kernel(xd)

        # Exact (N, F) output: the partial last block (if any) is a masked store —
        # no padding, no out[:N] slice, no extra HBM pass.
        return pl.pallas_call(
            kernel,
            out_shape=jax.ShapeDtypeStruct((N, F), out_dtype),
            grid=(pl.cdiv(N, tile),),
            in_specs=[
                pl.BlockSpec((tile, xd), lambda i: (i, 0)),   # x tile (native dtype)
                pl.BlockSpec((xd, F), lambda i: (0, 0)),      # scaled W^T (resident)
                pl.BlockSpec((1, F), lambda i: (0, 0)),       # scaled bias (resident)
            ],
            out_specs=pl.BlockSpec((tile, F), lambda i: (i, 0)),
            compiler_params=pltpu.CompilerParams(
                dimension_semantics=("parallel",),            # v7x: shard over 2 TCs
                vmem_limit_bytes=vmem_limit),
        )(x, w_t, b_row)


def reference_forward(x, v, g, b, sigma):
    """Pure-JAX transliteration of the PyTorch forward, for validation."""
    norm = jnp.sqrt(jnp.sum(v * v, axis=1, keepdims=True))
    w = g[:, None] * v / norm                                     # (F, x_dim)
    y = jnp.dot(x, w.T, precision=jax.lax.Precision.HIGHEST) + b[None, :]
    mu = jnp.mean(y, axis=-1, keepdims=True)
    return jnp.exp(-0.5 * (y - mu) ** 2 / (sigma ** 2))


if __name__ == "__main__":
    key = jax.random.PRNGKey(0)
    kx, kp = jax.random.split(key)

    N, x_dim, feature_dim = 1000, 3, 256
    x = jax.random.normal(kx, (N, x_dim), dtype=jnp.float32)

    enc = GaussianEncoderPallas(x_dim, feature_dim, init_range=0.1, sigma=0.1, key=kp)
    ref = reference_forward(x, enc.v, enc.g, enc.b, enc.sigma)

    # Small explicit tile -> multi-step grid and a masked partial last block
    # (1000 = 3*256 + 232) with no output padding / slicing round trip.
    out_small = jax.block_until_ready(enc(x, tile_n=256))
    assert out_small.shape == (N, feature_dim), out_small.shape
    err = float(jnp.max(jnp.abs(out_small - ref)))
    assert jnp.allclose(out_small, ref, atol=2e-5, rtol=1e-4), f"max abs err {err}"

    # Default (auto-tiled, VMEM-budgeted) path.
    out_auto = jax.block_until_ready(enc(x))
    err = float(jnp.max(jnp.abs(out_auto - ref)))
    assert jnp.allclose(out_auto, ref, atol=2e-5, rtol=1e-4), f"max abs err {err}"

    # Optional bf16 output path (halves the dominant output-store traffic).
    out_bf16 = jax.block_until_ready(enc(x, out_dtype=jnp.bfloat16))
    err_bf16 = float(jnp.max(jnp.abs(out_bf16.astype(jnp.float32) - ref)))
    assert err_bf16 < 1e-2, f"bf16 max abs err {err_bf16}"

    print("KERNEL_OK")
</pallas_src>

<mosaic_0001>
module attributes {stable_mosaic.version = 11 : i64} {
  func.func @kernel(%arg0: i32, %arg1: memref<256x3xf32, #tpu.memory_space<vmem>>, %arg2: memref<3x256xf32, #tpu.memory_space<vmem>>, %arg3: memref<1x256xf32, #tpu.memory_space<vmem>>, %arg4: memref<256x256xf32, #tpu.memory_space<vmem>>) attributes {dimension_semantics = [#tpu.dimension_semantics<parallel>], iteration_bounds = array<i64: 4>, scalar_prefetch = 0 : i64, scratch_operands = 0 : i64, tpu.core_type = #tpu.core_type<tc>, window_params = [{transform_indices = @transform_0, window_bounds = array<i64: 256, 3>}, {pipeline_mode = #tpu.pipeline_mode<synchronous>, transform_indices = @transform_1, window_bounds = array<i64: 3, 256>}, {pipeline_mode = #tpu.pipeline_mode<synchronous>, transform_indices = @transform_2, window_bounds = array<i64: 1, 256>}, {transform_indices = @transform_3, window_bounds = array<i64: 256, 256>}]} {
    %c0 = arith.constant 0 : index
    %c0_0 = arith.constant 0 : index
    %0 = vector.load %arg1[%c0, %c0_0] : memref<256x3xf32, #tpu.memory_space<vmem>>, vector<256x3xf32>
    %c0_1 = arith.constant 0 : index
    %c0_2 = arith.constant 0 : index
    %1 = vector.load %arg2[%c0_1, %c0_2] : memref<3x256xf32, #tpu.memory_space<vmem>>, vector<3x256xf32>
    %c0_3 = arith.constant 0 : index
    %c0_4 = arith.constant 0 : index
    %2 = vector.load %arg3[%c0_3, %c0_4] : memref<1x256xf32, #tpu.memory_space<vmem>>, vector<1x256xf32>
    %3 = vector.extract_strided_slice %0 {offsets = [0, 0], sizes = [256, 1], strides = [1, 1]} : vector<256x3xf32> to vector<256x1xf32>
    %4 = vector.extract_strided_slice %1 {offsets = [0, 0], sizes = [1, 256], strides = [1, 1]} : vector<3x256xf32> to vector<1x256xf32>
    %5 = vector.broadcast %3 : vector<256x1xf32> to vector<256x256xf32>
    %6 = vector.broadcast %4 : vector<1x256xf32> to vector<256x256xf32>
    %7 = arith.mulf %5, %6 : vector<256x256xf32>
    %8 = vector.broadcast %2 : vector<1x256xf32> to vector<256x256xf32>
    %9 = arith.addf %8, %7 : vector<256x256xf32>
    %10 = vector.extract_strided_slice %0 {offsets = [0, 1], sizes = [256, 1], strides = [1, 1]} : vector<256x3xf32> to vector<256x1xf32>
    %11 = vector.extract_strided_slice %1 {offsets = [1, 0], sizes = [1, 256], strides = [1, 1]} : vector<3x256xf32> to vector<1x256xf32>
    %12 = vector.broadcast %10 : vector<256x1xf32> to vector<256x256xf32>
    %13 = vector.broadcast %11 : vector<1x256xf32> to vector<256x256xf32>
    %14 = arith.mulf %12, %13 : vector<256x256xf32>
    %15 = arith.addf %9, %14 : vector<256x256xf32>
    %16 = vector.extract_strided_slice %0 {offsets = [0, 2], sizes = [256, 1], strides = [1, 1]} : vector<256x3xf32> to vector<256x1xf32>
    %17 = vector.extract_strided_slice %1 {offsets = [2, 0], sizes = [1, 256], strides = [1, 1]} : vector<3x256xf32> to vector<1x256xf32>
    %18 = vector.broadcast %16 : vector<256x1xf32> to vector<256x256xf32>
    %19 = vector.broadcast %17 : vector<1x256xf32> to vector<256x256xf32>
    %20 = arith.mulf %18, %19 : vector<256x256xf32>
    %21 = arith.addf %15, %20 : vector<256x256xf32>
    %cst = arith.constant dense<0.000000e+00> : vector<256xf32>
    %22 = vector.multi_reduction <add>, %21, %cst [1] : vector<256x256xf32> to vector<256xf32>
    %23 = vector.shape_cast %22 : vector<256xf32> to vector<256x1xf32>
    %cst_5 = arith.constant 2.560000e+02 : f32
    %24 = vector.broadcast %cst_5 : f32 to vector<256x1xf32>
    %25 = arith.divf %23, %24 : vector<256x1xf32>
    %26 = vector.broadcast %25 : vector<256x1xf32> to vector<256x256xf32>
    %27 = arith.subf %21, %26 : vector<256x256xf32>
    %28 = arith.mulf %27, %27 : vector<256x256xf32>
    %cst_6 = arith.constant 0.000000e+00 : f32
    %29 = vector.broadcast %cst_6 : f32 to vector<256x256xf32>
    %30 = arith.subf %29, %28 : vector<256x256xf32>
    %31 = math.exp %30 : vector<256x256xf32>
    %c0_7 = arith.constant 0 : index
    %c0_8 = arith.constant 0 : index
    %32 = vector.load %arg4[%c0_7, %c0_8] : memref<256x256xf32, #tpu.memory_space<vmem>>, vector<256x256xf32>
    tpu.vector_store %arg4[%c0_7, %c0_8], %31 {strides = array<i32>} : memref<256x256xf32, #tpu.memory_space<vmem>>, vector<256x256xf32>,
    return
  }
  func.func @transform_0(%arg0: i32) -> (i32, i32) {
    %c0_i32 = arith.constant 0 : i32
    %c0_i32_0 = arith.constant 0 : i32
    return %arg0, %c0_i32 : i32, i32
  }
  func.func @transform_1(%arg0: i32) -> (i32, i32) {
    %c0_i32 = arith.constant 0 : i32
    %c0_i32_0 = arith.constant 0 : i32
    %c0_i32_1 = arith.constant 0 : i32
    return %c0_i32, %c0_i32_0 : i32, i32
  }
  func.func @transform_2(%arg0: i32) -> (i32, i32) {
    %c0_i32 = arith.constant 0 : i32
    %c0_i32_0 = arith.constant 0 : i32
    %c0_i32_1 = arith.constant 0 : i32
    return %c0_i32, %c0_i32_0 : i32, i32
  }
  func.func @transform_3(%arg0: i32) -> (i32, i32) {
    %c0_i32 = arith.constant 0 : i32
    %c0_i32_0 = arith.constant 0 : i32
    return %arg0, %c0_i32 : i32, i32
  }
}

</mosaic_0001>

<llo_original>
// kernel: tpu_custom_call.1
$region0: #{tpu_custom_call.1}
  #allocation0 [shape = 'u32[]', space=smem, size = 0x4, offset = 0x4, fixed_abs, tag = 'smem constant byte address 0x4 - core index']
  #allocation1 [shape = 'u32[144,128]{1,0:T(1,128)}', space=vmem, size = 0x12000, scoped, tag = 'internal scratch']
  %s0 = inlined_call_operand.vmem [shape: f32[1000,3], index: 0, kind: input, shape index: {}]
  %s1 = inlined_call_operand.vmem [shape: f32[3,256], index: 1, kind: input, shape index: {}]
  %s2 = inlined_call_operand.vmem [shape: f32[1,256], index: 2, kind: input, shape index: {}]
  %s3 = inlined_call_operand.hbm [shape: f32[1000,256], index: 3, kind: output, shape index: {}]
  %s4 = sld [smem:[#allocation0]]
  $region45: #{tpu_custom_call.1} parent=0
    _
  %s6 = ssub.s32 1, %s4
  %s7 = scalar_select 0, %s6, %s4
  $region1: #{tpu_custom_call.1} parent=0
    #allocation2 [shape = 'u8[524288]{0}', space=vmem, size = 0x80000, scoped, tag = 'output window, operand 0']
    #allocation3 [shape = 's32[2]{0}', space=sflag, size = 0x8, scoped, tag = 'scoped memory for tpu_custom_call.1']
    %8 = vsyncpa [#allocation3], 0
    %s9 = scalar_lea.sflag [#allocation3], 1
    %10 = vsyncpa %s9, 0
    loop: start=0, step=1, limit=6
    $region2: #{tpu_custom_call.1} parent=1 // loop_pre_header
      _
    $region3: #{tpu_custom_call.1} parent=1 // loop_header
      %s12 = sphi 0, %s16
      %p13 = scmp.ge.s32.totalorder %s12, 6
      %s22 = sphi 0, %s24
      %s25 = sphi 0, %s22
      %s26 = sphi 0, %s25
      %s42 = sphi 0, %s26
      %s46 = sphi 0, %s46
      %s48 = sphi 0, %s46
      %s49 = sphi 0, %s48
      %s63 = sphi 0, %s49
      %s67 = sphi 0, %s67
      %s69 = sphi 0, %s67
      %s70 = sphi 0, %s69
      %s84 = sphi 0, %s70
      %s90 = sphi 0, %s92
      %s93 = sphi 0, %s90
      %s94 = sphi 0, %s93
      %s110 = sphi 0, %s94
    $region4: #{tpu_custom_call.1} parent=1 // loop_header_branch
      %15 = sbr.rel (%p13) target = $region8
    $region5: #{tpu_custom_call.1} parent=1 // loop_body
      %s17 = ssub.s32 %s12, 1
      %s18 = ssub.s32 %s12, 2
      %s19 = sadd.s32 %s12, 1
      %s20 = ssub.s32 %s12, %s19
      %p21 = scmp.eq.s32.totalorder %s20, 0
      %s23 = sadd.s32 %s22, 1
      %s24 = scalar_select %p21, %s22, %s23
      %p27 = pneg %p21
      %p28 = scmp.eq.s32.totalorder %s12, 3
      %p29 = por %p27, %p28
      %p30 = scmp.ne.s32.totalorder %s22, %s25
      %p31 = scmp.eq.s32.totalorder %s12, 0
      %p32 = por %p30, %p31
      %p33 = scmp.ne.s32.totalorder %s22, %s25
      %p34 = scmp.eq.s32.totalorder %s17, 3
      %p35 = por %p33, %p34
      %p36 = scmp.ne.s32.totalorder %s25, %s26
      %p37 = scmp.eq.s32.totalorder %s17, 0
      %p38 = por %p36, %p37
      %p39 = scmp.ne.s32.totalorder %s25, %s26
      %p40 = scmp.eq.s32.totalorder %s18, 3
      %p41 = por %p39, %p40
      %p43 = scmp.ne.s32.totalorder %s26, %s42
      %p44 = scmp.eq.s32.totalorder %s18, 0
      %p45 = por %p43, %p44
      %s47 = sadd.s32 %s46, 1
      %p50 = scmp.eq.s32.totalorder %s12, 3
      %p51 = scmp.ne.s32.totalorder %s46, %s48
      %p52 = scmp.eq.s32.totalorder %s12, 0
      %p53 = por %p51, %p52
      %p54 = scmp.ne.s32.totalorder %s46, %s48
      %p55 = scmp.eq.s32.totalorder %s17, 3
      %p56 = por %p54, %p55
      %p57 = scmp.ne.s32.totalorder %s48, %s49
      %p58 = scmp.eq.s32.totalorder %s17, 0
      %p59 = por %p57, %p58
      %p60 = scmp.ne.s32.totalorder %s48, %s49
      %p61 = scmp.eq.s32.totalorder %s18, 3
      %p62 = por %p60, %p61
      %p64 = scmp.ne.s32.totalorder %s49, %s63
      %p65 = scmp.eq.s32.totalorder %s18, 0
      %p66 = por %p64, %p65
      %s68 = sadd.s32 %s67, 1
      %p71 = scmp.eq.s32.totalorder %s12, 3
      %p72 = scmp.ne.s32.totalorder %s67, %s69
      %p73 = scmp.eq.s32.totalorder %s12, 0
      %p74 = por %p72, %p73
      %p75 = scmp.ne.s32.totalorder %s67, %s69
      %p76 = scmp.eq.s32.totalorder %s17, 3
      %p77 = por %p75, %p76
      %p78 = scmp.ne.s32.totalorder %s69, %s70
      %p79 = scmp.eq.s32.totalorder %s17, 0
      %p80 = por %p78, %p79
      %p81 = scmp.ne.s32.totalorder %s69, %s70
      %p82 = scmp.eq.s32.totalorder %s18, 3
      %p83 = por %p81, %p82
      %p85 = scmp.ne.s32.totalorder %s70, %s84
      %p86 = scmp.eq.s32.totalorder %s18, 0
      %p87 = por %p85, %p86
      %s88 = ssub.s32 %s12, %s19
      %p89 = scmp.eq.s32.totalorder %s88, 0
      %s91 = sadd.s32 %s90, 1
      %s92 = scalar_select %p89, %s90, %s91
      %p95 = pneg %p89
      %p96 = scmp.eq.s32.totalorder %s12, 3
      %p97 = por %p95, %p96
      %p98 = scmp.ne.s32.totalorder %s90, %s93
      %p99 = scmp.eq.s32.totalorder %s12, 0
      %p100 = por %p98, %p99
      %p101 = scmp.ne.s32.totalorder %s90, %s93
      %p102 = scmp.eq.s32.totalorder %s17, 3
      %p103 = por %p101, %p102
      %p104 = scmp.ne.s32.totalorder %s93, %s94
      %p105 = scmp.eq.s32.totalorder %s17, 0
      %p106 = por %p104, %p105
      %p107 = scmp.ne.s32.totalorder %s93, %s94
      %p108 = scmp.eq.s32.totalorder %s18, 3
      %p109 = por %p107, %p108
      %p111 = scmp.ne.s32.totalorder %s94, %s110
      %p112 = scmp.eq.s32.totalorder %s18, 0
      %p113 = por %p111, %p112
      %p114 = scmp.le.s32.totalorder 1, %s12
      %p115 = scmp.lt.s32.totalorder %s12, 5
      %p116 = pnand %p114, %p115
      %p117 = pneg %p116
      // Predicated region
      $region9: #{tpu_custom_call.1} parent=5 // pred_check
        _
      $region10: #{tpu_custom_call.1} parent=5 // pred_check_branch
        %119 = sbr.rel (%p116) target = $region12
      $region11: #{tpu_custom_call.1} parent=5 // pred_region
        %s120 = ssub.s32 %s12, 1
        // Predicated region
        $region13: #{tpu_custom_call.1} parent=11 // pred_check
          %p121 = pneg %p59
        $region14: #{tpu_custom_call.1} parent=11 // pred_check_branch
          %123 = sbr.rel (%p121) target = $region16
        $region15: #{tpu_custom_call.1} parent=11 // pred_region
          _
        $region16: #{tpu_custom_call.1} parent=11 // pred_fallthru
          _
        // Predicated region
        $region17: #{tpu_custom_call.1} parent=11 // pred_check
          %p124 = pneg %p80
        $region18: #{tpu_custom_call.1} parent=11 // pred_check_branch
          %126 = sbr.rel (%p124) target = $region20
        $region19: #{tpu_custom_call.1} parent=11 // pred_region
          _
        $region20: #{tpu_custom_call.1} parent=11 // pred_fallthru
          _
      $region12: #{tpu_custom_call.1} parent=5 // pred_fallthru
        _
      %p127 = scmp.lt.s32.totalorder %s12, 4
      // Predicated region
      $region21: #{tpu_custom_call.1} parent=5 // pred_check
        %p128 = pneg %p127
      $region22: #{tpu_custom_call.1} parent=5 // pred_check_branch
        %130 = sbr.rel (%p128) target = $region24
      $region23: #{tpu_custom_call.1} parent=5 // pred_region
        // Predicated region
        $region25: #{tpu_custom_call.1} parent=23 // pred_check
          %p131 = pneg %p32
        $region26: #{tpu_custom_call.1} parent=23 // pred_check_branch
          %133 = sbr.rel (%p131) target = $region28
        $region27: #{tpu_custom_call.1} parent=23 // pred_region
          %s134 = smul.u32 32, %s12
          %s135 = ssub.s32 125, %s134
          %p136 = scmp.lt.s32.totalorder %s135, 32
          %s137 = scalar_select %p136, %s135, 32
          %s138 = smul.u32 128, %s137
          %p139 = scmp.lt.s32.totalorder %s134, 124
          %s140 = scalar_select %p139, %s134, 124
          %s141 = smul.addr %s140, 8
          %s142 = scalar_lea.vmem %s0, %s141
          %s143 = smul.u32 32, %s12
          %s144 = ssub.s32 125, %s143
          %p145 = scmp.lt.s32.totalorder %s144, 32
          %s146 = scalar_select %p145, %s144, 32
          %s147 = smul.u32 128, %s146
        $region28: #{tpu_custom_call.1} parent=23 // pred_fallthru
          _
      $region24: #{tpu_custom_call.1} parent=5 // pred_fallthru
        _
      %p148 = scmp.le.s32.totalorder 1, %s12
      %p149 = scmp.lt.s32.totalorder %s12, 5
      %p150 = pnand %p148, %p149
      %p151 = pneg %p150
      // Predicated region
      $region29: #{tpu_custom_call.1} parent=5 // pred_check
        _
      $region30: #{tpu_custom_call.1} parent=5 // pred_check_branch
        %153 = sbr.rel (%p150) target = $region32
      $region31: #{tpu_custom_call.1} parent=5 // pred_region
        %s154 = ssub.s32 %s12, 1
        %s155 = smul.u32 32, %s17
        %s156 = ssub.s32 125, %s155
        %p157 = scmp.lt.s32.totalorder %s156, 32
        %s158 = scalar_select %p157, %s156, 32
        %s159 = smul.u32 128, %s158
        %p160 = scmp.lt.s32.totalorder %s155, 124
        %s161 = scalar_select %p160, %s155, 124
        %s162 = smul.addr %s161, 8
        %s163 = scalar_lea.vmem %s0, %s162
        %p164 = pneg %p38
        %p165 = pneg %p35
        %p166 = pneg %p59
        %p167 = pneg %p56
        %p168 = pneg %p80
        %p169 = pneg %p77
        %p170 = pneg %p106
        %p171 = pneg %p103
        %s172 = sand.u32 %s93, 1
        %s173 = scalar_lea.sflag [#allocation3], %s172
        %s174 = sand.u32 %s93, 1
        %s175 = smul.addr %s174, 512
        %s176 = scalar_lea.vmem [#allocation2], %s175
        %s177 = smul.u32 32, %s17
        %s178 = ssub.s32 125, %s177
        %p179 = scmp.lt.s32.totalorder %s178, 32
        %s180 = scalar_select %p179, %s178, 32
        %s181 = smul.u32 128, %s180
        %p182 = scmp.lt.s32.totalorder %s177, 124
        %s183 = scalar_select %p182, %s177, 124
        %s184 = smul.addr %s183, 8
        %s185 = scalar_lea.vmem %s0, %s184
        %s186 = smul.u32 32, %s17
        %s187 = ssub.s32 125, %s186
        %p188 = scmp.lt.s32.totalorder %s187, 32
        %s189 = scalar_select %p188, %s187, 32
        %s190 = smul.u32 128, %s189
        %s191 = smul.u32 32, %s17
        %s192 = ssub.s32 125, %s191
        %p193 = scmp.lt.s32.totalorder %s192, 32
        %s194 = scalar_select %p193, %s192, 32
        %s195 = smul.u32 128, %s194
        %s196 = smul.u32 %s195, 2
        %v197 = vld [vmem:[%s185] sm:$0xff]
        %v198 = vld [vmem:[%s185 + $0x8] sm:$0xff]
        %v199 = vld [vmem:[%s185 + $0x10] sm:$0xff]
        %v200 = vld [vmem:[%s185 + $0x18] sm:$0xff]
        %v201 = vld [vmem:[%s185 + $0x20] sm:$0xff]
        %v202 = vld [vmem:[%s185 + $0x28] sm:$0xff]
        %v203 = vld [vmem:[%s185 + $0x30] sm:$0xff]
        %v204 = vld [vmem:[%s185 + $0x38] sm:$0xff]
        %v205 = vld [vmem:[%s185 + $0x40] sm:$0xff]
        %v206 = vld [vmem:[%s185 + $0x48] sm:$0xff]
        %v207 = vld [vmem:[%s185 + $0x50] sm:$0xff]
        %v208 = vld [vmem:[%s185 + $0x58] sm:$0xff]
        %v209 = vld [vmem:[%s185 + $0x60] sm:$0xff]
        %v210 = vld [vmem:[%s185 + $0x68] sm:$0xff]
        %v211 = vld [vmem:[%s185 + $0x70] sm:$0xff]
        %v212 = vld [vmem:[%s185 + $0x78] sm:$0xff]
        %v213 = vld [vmem:[%s185 + $0x80] sm:$0xff]
        %v214 = vld [vmem:[%s185 + $0x88] sm:$0xff]
        %v215 = vld [vmem:[%s185 + $0x90] sm:$0xff]
        %v216 = vld [vmem:[%s185 + $0x98] sm:$0xff]
        %v217 = vld [vmem:[%s185 + $0xa0] sm:$0xff]
        %v218 = vld [vmem:[%s185 + $0xa8] sm:$0xff]
        %v219 = vld [vmem:[%s185 + $0xb0] sm:$0xff]
        %v220 = vld [vmem:[%s185 + $0xb8] sm:$0xff]
        %v221 = vld [vmem:[%s185 + $0xc0] sm:$0xff]
        %v222 = vld [vmem:[%s185 + $0xc8] sm:$0xff]
        %v223 = vld [vmem:[%s185 + $0xd0] sm:$0xff]
        %v224 = vld [vmem:[%s185 + $0xd8] sm:$0xff]
        %v225 = vld [vmem:[%s185 + $0xe0] sm:$0xff]
        %v226 = vld [vmem:[%s185 + $0xe8] sm:$0xff]
        %v227 = vld [vmem:[%s185 + $0xf0] sm:$0xff]
        %v228 = vld [vmem:[%s185 + $0xf8] sm:$0xff]
        %v229 = vld [vmem:[%s1] sm:$0x77]
        %v230 = vld [vmem:[%s2] sm:$0x3]
        %232 = vset.pattern.permute.xlu0 0
        %233 = vperm.xlu0 %232, %v197
        %v234 = vpop.permute.xlu0 %233
        %237 = vset.pattern.permute.xlu0 0
        %238 = vperm.xlu0 %237, %v198
        %v239 = vpop.permute.xlu0 %238
        %242 = vset.pattern.permute.xlu0 0
        %243 = vperm.xlu0 %242, %v199
        %v244 = vpop.permute.xlu0 %243
        %247 = vset.pattern.permute.xlu0 0
        %248 = vperm.xlu0 %247, %v200
        %v249 = vpop.permute.xlu0 %248
        %252 = vset.pattern.permute.xlu0 0
        %253 = vperm.xlu0 %252, %v201
        %v254 = vpop.permute.xlu0 %253
        %257 = vset.pattern.permute.xlu0 0
        %258 = vperm.xlu0 %257, %v202
        %v259 = vpop.permute.xlu0 %258
        %262 = vset.pattern.permute.xlu0 0
        %263 = vperm.xlu0 %262, %v203
        %v264 = vpop.permute.xlu0 %263
        %267 = vset.pattern.permute.xlu0 0
        %268 = vperm.xlu0 %267, %v204
        %v269 = vpop.permute.xlu0 %268
        %272 = vset.pattern.permute.xlu0 0
        %273 = vperm.xlu0 %272, %v205
        %v274 = vpop.permute.xlu0 %273
        %277 = vset.pattern.permute.xlu0 0
        %278 = vperm.xlu0 %277, %v206
        %v279 = vpop.permute.xlu0 %278
        %282 = vset.pattern.permute.xlu0 0
        %283 = vperm.xlu0 %282, %v207
        %v284 = vpop.permute.xlu0 %283
        %287 = vset.pattern.permute.xlu0 0
        %288 = vperm.xlu0 %287, %v208
        %v289 = vpop.permute.xlu0 %288
        %292 = vset.pattern.permute.xlu0 0
        %293 = vperm.xlu0 %292, %v209
        %v294 = vpop.permute.xlu0 %293
        %297 = vset.pattern.permute.xlu0 0
        %298 = vperm.xlu0 %297, %v210
        %v299 = vpop.permute.xlu0 %298
        %302 = vset.pattern.permute.xlu0 0
        %303 = vperm.xlu0 %302, %v211
        %v304 = vpop.permute.xlu0 %303
        %307 = vset.pattern.permute.xlu0 0
        %308 = vperm.xlu0 %307, %v212
        %v309 = vpop.permute.xlu0 %308
        %312 = vset.pattern.permute.xlu0 0
        %313 = vperm.xlu0 %312, %v213
        %v314 = vpop.permute.xlu0 %313
        %317 = vset.pattern.permute.xlu0 0
        %318 = vperm.xlu0 %317, %v214
        %v319 = vpop.permute.xlu0 %318
        %322 = vset.pattern.permute.xlu0 0
        %323 = vperm.xlu0 %322, %v215
        %v324 = vpop.permute.xlu0 %323
        %327 = vset.pattern.permute.xlu0 0
        %328 = vperm.xlu0 %327, %v216
        %v329 = vpop.permute.xlu0 %328
        %332 = vset.pattern.permute.xlu0 0
        %333 = vperm.xlu0 %332, %v217
        %v334 = vpop.permute.xlu0 %333
        %337 = vset.pattern.permute.xlu0 0
        %338 = vperm.xlu0 %337, %v218
        %v339 = vpop.permute.xlu0 %338
        %342 = vset.pattern.permute.xlu0 0
        %343 = vperm.xlu0 %342, %v219
        %v344 = vpop.permute.xlu0 %343
        %347 = vset.pattern.permute.xlu0 0
        %348 = vperm.xlu0 %347, %v220
        %v349 = vpop.permute.xlu0 %348
        %352 = vset.pattern.permute.xlu0 0
        %353 = vperm.xlu0 %352, %v221
        %v354 = vpop.permute.xlu0 %353
        %357 = vset.pattern.permute.xlu0 0
        %358 = vperm.xlu0 %357, %v222
        %v359 = vpop.permute.xlu0 %358
        %362 = vset.pattern.permute.xlu0 0
        %363 = vperm.xlu0 %362, %v223
        %v364 = vpop.permute.xlu0 %363
        %367 = vset.pattern.permute.xlu0 0
        %368 = vperm.xlu0 %367, %v224
        %v369 = vpop.permute.xlu0 %368
        %372 = vset.pattern.permute.xlu0 0
        %373 = vperm.xlu0 %372, %v225
        %v374 = vpop.permute.xlu0 %373
        %377 = vset.pattern.permute.xlu0 0
        %378 = vperm.xlu0 %377, %v226
        %v379 = vpop.permute.xlu0 %378
        %382 = vset.pattern.permute.xlu0 0
        %383 = vperm.xlu0 %382, %v227
        %v384 = vpop.permute.xlu0 %383
        %387 = vset.pattern.permute.xlu0 0
        %388 = vperm.xlu0 %387, %v228
        %v389 = vpop.permute.xlu0 %388
        %v392 = vlaneseq
        %v393 = vshrl.u32 %v392, 7
        %v394 = vsub.s32 0, %v393
        %v395 = vrot.slane %v229, %v394
        %v396 = vlaneseq
        %v397 = vshrl.u32 %v396, 7
        %v398 = vsub.s32 4, %v397
        %v399 = vrot.slane %v229, %v398
        %v402 = vlaneseq
        %v403 = vshrl.u32 %v402, 7
        %v404 = vsub.s32 0, %v403
        %v405 = vrot.slane %v395, %v404
        %v406 = vlaneseq
        %v407 = vshrl.u32 %v406, 7
        %v408 = vsub.s32 0, %v407
        %v409 = vrot.slane %v399, %v408
        %v410 = vmul.f32 %v234, %v405
        %v411 = vmul.f32 %v234, %v409
        %v412 = vmul.f32 %v239, %v405
        %v413 = vmul.f32 %v239, %v409
        %v414 = vmul.f32 %v244, %v405
        %v415 = vmul.f32 %v244, %v409
        %v416 = vmul.f32 %v249, %v405
        %v417 = vmul.f32 %v249, %v409
        %v418 = vmul.f32 %v254, %v405
        %v419 = vmul.f32 %v254, %v409
        %v420 = vmul.f32 %v259, %v405
        %v421 = vmul.f32 %v259, %v409
        %v422 = vmul.f32 %v264, %v405
        %v423 = vmul.f32 %v264, %v409
        %v424 = vmul.f32 %v269, %v405
        %v425 = vmul.f32 %v269, %v409
        %v426 = vmul.f32 %v274, %v405
        %v427 = vmul.f32 %v274, %v409
        %v428 = vmul.f32 %v279, %v405
        %v429 = vmul.f32 %v279, %v409
        %v430 = vmul.f32 %v284, %v405
        %v431 = vmul.f32 %v284, %v409
        %v432 = vmul.f32 %v289, %v405
        %v433 = vmul.f32 %v289, %v409
        %v434 = vmul.f32 %v294, %v405
        %v435 = vmul.f32 %v294, %v409
        %v436 = vmul.f32 %v299, %v405
        %v437 = vmul.f32 %v299, %v409
        %v438 = vmul.f32 %v304, %v405
        %v439 = vmul.f32 %v304, %v409
        %v440 = vmul.f32 %v309, %v405
        %v441 = vmul.f32 %v309, %v409
        %v442 = vmul.f32 %v314, %v405
        %v443 = vmul.f32 %v314, %v409
        %v444 = vmul.f32 %v319, %v405
        %v445 = vmul.f32 %v319, %v409
        %v446 = vmul.f32 %v324, %v405
        %v447 = vmul.f32 %v324, %v409
        %v448 = vmul.f32 %v329, %v405
        %v449 = vmul.f32 %v329, %v409
        %v450 = vmul.f32 %v334, %v405
        %v451 = vmul.f32 %v334, %v409
        %v452 = vmul.f32 %v339, %v405
        %v453 = vmul.f32 %v339, %v409
        %v454 = vmul.f32 %v344, %v405
        %v455 = vmul.f32 %v344, %v409
        %v456 = vmul.f32 %v349, %v405
        %v457 = vmul.f32 %v349, %v409
        %v458 = vmul.f32 %v354, %v405
        %v459 = vmul.f32 %v354, %v409
        %v460 = vmul.f32 %v359, %v405
        %v461 = vmul.f32 %v359, %v409
        %v462 = vmul.f32 %v364, %v405
        %v463 = vmul.f32 %v364, %v409
        %v464 = vmul.f32 %v369, %v405
        %v465 = vmul.f32 %v369, %v409
        %v466 = vmul.f32 %v374, %v405
        %v467 = vmul.f32 %v374, %v409
        %v468 = vmul.f32 %v379, %v405
        %v469 = vmul.f32 %v379, %v409
        %v470 = vmul.f32 %v384, %v405
        %v471 = vmul.f32 %v384, %v409
        %v472 = vmul.f32 %v389, %v405
        %v473 = vmul.f32 %v389, %v409
        %v475 = vlaneseq
        %v476 = vshrl.u32 %v475, 7
        %v477 = vsub.s32 0, %v476
        %v478 = vrot.slane %v230, %v477
        %v479 = vlaneseq
        %v480 = vshrl.u32 %v479, 7
        %v481 = vsub.s32 1, %v480
        %v482 = vrot.slane %v230, %v481
        %v485 = vadd.f32 %v478, %v410
        %v486 = vadd.f32 %v482, %v411
        %v487 = vadd.f32 %v478, %v412
        %v488 = vadd.f32 %v482, %v413
        %v489 = vadd.f32 %v478, %v414
        %v490 = vadd.f32 %v482, %v415
        %v491 = vadd.f32 %v478, %v416
        %v492 = vadd.f32 %v482, %v417
        %v493 = vadd.f32 %v478, %v418
        %v494 = vadd.f32 %v482, %v419
        %v495 = vadd.f32 %v478, %v420
        %v496 = vadd.f32 %v482, %v421
        %v497 = vadd.f32 %v478, %v422
        %v498 = vadd.f32 %v482, %v423
        %v499 = vadd.f32 %v478, %v424
        %v500 = vadd.f32 %v482, %v425
        %v501 = vadd.f32 %v478, %v426
        %v502 = vadd.f32 %v482, %v427
        %v503 = vadd.f32 %v478, %v428
        %v504 = vadd.f32 %v482, %v429
        %v505 = vadd.f32 %v478, %v430
        %v506 = vadd.f32 %v482, %v431
        %v507 = vadd.f32 %v478, %v432
        %v508 = vadd.f32 %v482, %v433
        %v509 = vadd.f32 %v478, %v434
        %v510 = vadd.f32 %v482, %v435
        %v511 = vadd.f32 %v478, %v436
        %v512 = vadd.f32 %v482, %v437
        %v513 = vadd.f32 %v478, %v438
        %v514 = vadd.f32 %v482, %v439
        %v515 = vadd.f32 %v478, %v440
        %v516 = vadd.f32 %v482, %v441
        %v517 = vadd.f32 %v478, %v442
        %v518 = vadd.f32 %v482, %v443
        %v519 = vadd.f32 %v478, %v444
        %v520 = vadd.f32 %v482, %v445
        %v521 = vadd.f32 %v478, %v446
        %v522 = vadd.f32 %v482, %v447
        %v523 = vadd.f32 %v478, %v448
        %v524 = vadd.f32 %v482, %v449
        %v525 = vadd.f32 %v478, %v450
        %v526 = vadd.f32 %v482, %v451
        %v527 = vadd.f32 %v478, %v452
        %v528 = vadd.f32 %v482, %v453
        %v529 = vadd.f32 %v478, %v454
        %v530 = vadd.f32 %v482, %v455
        %v531 = vadd.f32 %v478, %v456
        %v532 = vadd.f32 %v482, %v457
        %v533 = vadd.f32 %v478, %v458
        %v534 = vadd.f32 %v482, %v459
        %v535 = vadd.f32 %v478, %v460
        %v536 = vadd.f32 %v482, %v461
        %v537 = vadd.f32 %v478, %v462
        %v538 = vadd.f32 %v482, %v463
        %v539 = vadd.f32 %v478, %v464
        %v540 = vadd.f32 %v482, %v465
        %v541 = vadd.f32 %v478, %v466
        %v542 = vadd.f32 %v482, %v467
        %v543 = vadd.f32 %v478, %v468
        %v544 = vadd.f32 %v482, %v469
        %v545 = vadd.f32 %v478, %v470
        %v546 = vadd.f32 %v482, %v471
        %v547 = vadd.f32 %v478, %v472
        %v548 = vadd.f32 %v482, %v473
        %549 = vset.pattern.permute.xlu0 1
        %550 = vperm.xlu0 %549, %v197
        %v551 = vpop.permute.xlu0 %550
        %553 = vset.pattern.permute.xlu0 1
        %554 = vperm.xlu0 %553, %v198
        %v555 = vpop.permute.xlu0 %554
        %557 = vset.pattern.permute.xlu0 1
        %558 = vperm.xlu0 %557, %v199
        %v559 = vpop.permute.xlu0 %558
        %561 = vset.pattern.permute.xlu0 1
        %562 = vperm.xlu0 %561, %v200
        %v563 = vpop.permute.xlu0 %562
        %565 = vset.pattern.permute.xlu0 1
        %566 = vperm.xlu0 %565, %v201
        %v567 = vpop.permute.xlu0 %566
        %569 = vset.pattern.permute.xlu0 1
        %570 = vperm.xlu0 %569, %v202
        %v571 = vpop.permute.xlu0 %570
        %573 = vset.pattern.permute.xlu0 1
        %574 = vperm.xlu0 %573, %v203
        %v575 = vpop.permute.xlu0 %574
        %577 = vset.pattern.permute.xlu0 1
        %578 = vperm.xlu0 %577, %v204
        %v579 = vpop.permute.xlu0 %578
        %581 = vset.pattern.permute.xlu0 1
        %582 = vperm.xlu0 %581, %v205
        %v583 = vpop.permute.xlu0 %582
        %585 = vset.pattern.permute.xlu0 1
        %586 = vperm.xlu0 %585, %v206
        %v587 = vpop.permute.xlu0 %586
        %589 = vset.pattern.permute.xlu0 1
        %590 = vperm.xlu0 %589, %v207
        %v591 = vpop.permute.xlu0 %590
        %593 = vset.pattern.permute.xlu0 1
        %594 = vperm.xlu0 %593, %v208
        %v595 = vpop.permute.xlu0 %594
        %597 = vset.pattern.permute.xlu0 1
        %598 = vperm.xlu0 %597, %v209
        %v599 = vpop.permute.xlu0 %598
        %601 = vset.pattern.permute.xlu0 1
        %602 = vperm.xlu0 %601, %v210
        %v603 = vpop.permute.xlu0 %602
        %605 = vset.pattern.permute.xlu0 1
        %606 = vperm.xlu0 %605, %v211
        %v607 = vpop.permute.xlu0 %606
        %609 = vset.pattern.permute.xlu0 1
        %610 = vperm.xlu0 %609, %v212
        %v611 = vpop.permute.xlu0 %610
        %613 = vset.pattern.permute.xlu0 1
        %614 = vperm.xlu0 %613, %v213
        %v615 = vpop.permute.xlu0 %614
        %617 = vset.pattern.permute.xlu0 1
        %618 = vperm.xlu0 %617, %v214
        %v619 = vpop.permute.xlu0 %618
        %621 = vset.pattern.permute.xlu0 1
        %622 = vperm.xlu0 %621, %v215
        %v623 = vpop.permute.xlu0 %622
        %625 = vset.pattern.permute.xlu0 1
        %626 = vperm.xlu0 %625, %v216
        %v627 = vpop.permute.xlu0 %626
        %629 = vset.pattern.permute.xlu0 1
        %630 = vperm.xlu0 %629, %v217
        %v631 = vpop.permute.xlu0 %630
        %633 = vset.pattern.permute.xlu0 1
        %634 = vperm.xlu0 %633, %v218
        %v635 = vpop.permute.xlu0 %634
        %637 = vset.pattern.permute.xlu0 1
        %638 = vperm.xlu0 %637, %v219
        %v639 = vpop.permute.xlu0 %638
        %641 = vset.pattern.permute.xlu0 1
        %642 = vperm.xlu0 %641, %v220
        %v643 = vpop.permute.xlu0 %642
        %645 = vset.pattern.permute.xlu0 1
        %646 = vperm.xlu0 %645, %v221
        %v647 = vpop.permute.xlu0 %646
        %649 = vset.pattern.permute.xlu0 1
        %650 = vperm.xlu0 %649, %v222
        %v651 = vpop.permute.xlu0 %650
        %653 = vset.pattern.permute.xlu0 1
        %654 = vperm.xlu0 %653, %v223
        %v655 = vpop.permute.xlu0 %654
        %657 = vset.pattern.permute.xlu0 1
        %658 = vperm.xlu0 %657, %v224
        %v659 = vpop.permute.xlu0 %658
        %661 = vset.pattern.permute.xlu0 1
        %662 = vperm.xlu0 %661, %v225
        %v663 = vpop.permute.xlu0 %662
        %665 = vset.pattern.permute.xlu0 1
        %666 = vperm.xlu0 %665, %v226
        %v667 = vpop.permute.xlu0 %666
        %669 = vset.pattern.permute.xlu0 1
        %670 = vperm.xlu0 %669, %v227
        %v671 = vpop.permute.xlu0 %670
        %673 = vset.pattern.permute.xlu0 1
        %674 = vperm.xlu0 %673, %v228
        %v675 = vpop.permute.xlu0 %674
        %v677 = vlaneseq
        %v678 = vshrl.u32 %v677, 7
        %v679 = vsub.s32 1, %v678
        %v680 = vrot.slane %v229, %v679
        %v681 = vlaneseq
        %v682 = vshrl.u32 %v681, 7
        %v683 = vsub.s32 5, %v682
        %v684 = vrot.slane %v229, %v683
        %v687 = vlaneseq
        %v688 = vshrl.u32 %v687, 7
        %v689 = vsub.s32 1, %v688
        %v690 = vrot.slane %v680, %v689
        %v691 = vlaneseq
        %v692 = vshrl.u32 %v691, 7
        %v693 = vsub.s32 1, %v692
        %v694 = vrot.slane %v684, %v693
        %v695 = vmul.f32 %v551, %v690
        %v696 = vmul.f32 %v551, %v694
        %v697 = vmul.f32 %v555, %v690
        %v698 = vmul.f32 %v555, %v694
        %v699 = vmul.f32 %v559, %v690
        %v700 = vmul.f32 %v559, %v694
        %v701 = vmul.f32 %v563, %v690
        %v702 = vmul.f32 %v563, %v694
        %v703 = vmul.f32 %v567, %v690
        %v704 = vmul.f32 %v567, %v694
        %v705 = vmul.f32 %v571, %v690
        %v706 = vmul.f32 %v571, %v694
        %v707 = vmul.f32 %v575, %v690
        %v708 = vmul.f32 %v575, %v694
        %v709 = vmul.f32 %v579, %v690
        %v710 = vmul.f32 %v579, %v694
        %v711 = vmul.f32 %v583, %v690
        %v712 = vmul.f32 %v583, %v694
        %v713 = vmul.f32 %v587, %v690
        %v714 = vmul.f32 %v587, %v694
        %v715 = vmul.f32 %v591, %v690
        %v716 = vmul.f32 %v591, %v694
        %v717 = vmul.f32 %v595, %v690
        %v718 = vmul.f32 %v595, %v694
        %v719 = vmul.f32 %v599, %v690
        %v720 = vmul.f32 %v599, %v694
        %v721 = vmul.f32 %v603, %v690
        %v722 = vmul.f32 %v603, %v694
        %v723 = vmul.f32 %v607, %v690
        %v724 = vmul.f32 %v607, %v694
        %v725 = vmul.f32 %v611, %v690
        %v726 = vmul.f32 %v611, %v694
        %v727 = vmul.f32 %v615, %v690
        %v728 = vmul.f32 %v615, %v694
        %v729 = vmul.f32 %v619, %v690
        %v730 = vmul.f32 %v619, %v694
        %v731 = vmul.f32 %v623, %v690
        %v732 = vmul.f32 %v623, %v694
        %v733 = vmul.f32 %v627, %v690
        %v734 = vmul.f32 %v627, %v694
        %v735 = vmul.f32 %v631, %v690
        %v736 = vmul.f32 %v631, %v694
        %v737 = vmul.f32 %v635, %v690
        %v738 = vmul.f32 %v635, %v694
        %v739 = vmul.f32 %v639, %v690
        %v740 = vmul.f32 %v639, %v694
        %v741 = vmul.f32 %v643, %v690
        %v742 = vmul.f32 %v643, %v694
        %v743 = vmul.f32 %v647, %v690
        %v744 = vmul.f32 %v647, %v694
        %v745 = vmul.f32 %v651, %v690
        %v746 = vmul.f32 %v651, %v694
        %v747 = vmul.f32 %v655, %v690
        %v748 = vmul.f32 %v655, %v694
        %v749 = vmul.f32 %v659, %v690
        %v750 = vmul.f32 %v659, %v694
        %v751 = vmul.f32 %v663, %v690
        %v752 = vmul.f32 %v663, %v694
        %v753 = vmul.f32 %v667, %v690
        %v754 = vmul.f32 %v667, %v694
        %v755 = vmul.f32 %v671, %v690
        %v756 = vmul.f32 %v671, %v694
        %v757 = vmul.f32 %v675, %v690
        %v758 = vmul.f32 %v675, %v694
        %v759 = vadd.f32 %v485, %v695
        %v760 = vadd.f32 %v486, %v696
        %v761 = vadd.f32 %v487, %v697
        %v762 = vadd.f32 %v488, %v698
        %v763 = vadd.f32 %v489, %v699
        %v764 = vadd.f32 %v490, %v700
        %v765 = vadd.f32 %v491, %v701
        %v766 = vadd.f32 %v492, %v702
        %v767 = vadd.f32 %v493, %v703
        %v768 = vadd.f32 %v494, %v704
        %v769 = vadd.f32 %v495, %v705
        %v770 = vadd.f32 %v496, %v706
        %v771 = vadd.f32 %v497, %v707
        %v772 = vadd.f32 %v498, %v708
        %v773 = vadd.f32 %v499, %v709
        %v774 = vadd.f32 %v500, %v710
        %v775 = vadd.f32 %v501, %v711
        %v776 = vadd.f32 %v502, %v712
        %v777 = vadd.f32 %v503, %v713
        %v778 = vadd.f32 %v504, %v714
        %v779 = vadd.f32 %v505, %v715
        %v780 = vadd.f32 %v506, %v716
        %v781 = vadd.f32 %v507, %v717
        %v782 = vadd.f32 %v508, %v718
        %v783 = vadd.f32 %v509, %v719
        %v784 = vadd.f32 %v510, %v720
        %v785 = vadd.f32 %v511, %v721
        %v786 = vadd.f32 %v512, %v722
        %v787 = vadd.f32 %v513, %v723
        %v788 = vadd.f32 %v514, %v724
        %v789 = vadd.f32 %v515, %v725
        %v790 = vadd.f32 %v516, %v726
        %v791 = vadd.f32 %v517, %v727
        %v792 = vadd.f32 %v518, %v728
        %v793 = vadd.f32 %v519, %v729
        %v794 = vadd.f32 %v520, %v730
        %v795 = vadd.f32 %v521, %v731
        %v796 = vadd.f32 %v522, %v732
        %v797 = vadd.f32 %v523, %v733
        %v798 = vadd.f32 %v524, %v734
        %v799 = vadd.f32 %v525, %v735
        %v800 = vadd.f32 %v526, %v736
        %v801 = vadd.f32 %v527, %v737
        %v802 = vadd.f32 %v528, %v738
        %v803 = vadd.f32 %v529, %v739
        %v804 = vadd.f32 %v530, %v740
        %v805 = vadd.f32 %v531, %v741
        %v806 = vadd.f32 %v532, %v742
        %v807 = vadd.f32 %v533, %v743
        %v808 = vadd.f32 %v534, %v744
        %v809 = vadd.f32 %v535, %v745
        %v810 = vadd.f32 %v536, %v746
        %v811 = vadd.f32 %v537, %v747
        %v812 = vadd.f32 %v538, %v748
        %v813 = vadd.f32 %v539, %v749
        %v814 = vadd.f32 %v540, %v750
        %v815 = vadd.f32 %v541, %v751
        %v816 = vadd.f32 %v542, %v752
        %v817 = vadd.f32 %v543, %v753
        %v818 = vadd.f32 %v544, %v754
        %v819 = vadd.f32 %v545, %v755
        %v820 = vadd.f32 %v546, %v756
        %v821 = vadd.f32 %v547, %v757
        %v822 = vadd.f32 %v548, %v758
        %823 = vset.pattern.permute.xlu0 2
        %824 = vperm.xlu0 %823, %v197
        %v825 = vpop.permute.xlu0 %824
        %827 = vset.pattern.permute.xlu0 2
        %828 = vperm.xlu0 %827, %v198
        %v829 = vpop.permute.xlu0 %828
        %831 = vset.pattern.permute.xlu0 2
        %832 = vperm.xlu0 %831, %v199
        %v833 = vpop.permute.xlu0 %832
        %835 = vset.pattern.permute.xlu0 2
        %836 = vperm.xlu0 %835, %v200
        %v837 = vpop.permute.xlu0 %836
        %839 = vset.pattern.permute.xlu0 2
        %840 = vperm.xlu0 %839, %v201
        %v841 = vpop.permute.xlu0 %840
        %843 = vset.pattern.permute.xlu0 2
        %844 = vperm.xlu0 %843, %v202
        %v845 = vpop.permute.xlu0 %844
        %847 = vset.pattern.permute.xlu0 2
        %848 = vperm.xlu0 %847, %v203
        %v849 = vpop.permute.xlu0 %848
        %851 = vset.pattern.permute.xlu0 2
        %852 = vperm.xlu0 %851, %v204
        %v853 = vpop.permute.xlu0 %852
        %855 = vset.pattern.permute.xlu0 2
        %856 = vperm.xlu0 %855, %v205
        %v857 = vpop.permute.xlu0 %856
        %859 = vset.pattern.permute.xlu0 2
        %860 = vperm.xlu0 %859, %v206
        %v861 = vpop.permute.xlu0 %860
        %863 = vset.pattern.permute.xlu0 2
        %864 = vperm.xlu0 %863, %v207
        %v865 = vpop.permute.xlu0 %864
        %867 = vset.pattern.permute.xlu0 2
        %868 = vperm.xlu0 %867, %v208
        %v869 = vpop.permute.xlu0 %868
        %871 = vset.pattern.permute.xlu0 2
        %872 = vperm.xlu0 %871, %v209
        %v873 = vpop.permute.xlu0 %872
        %875 = vset.pattern.permute.xlu0 2
        %876 = vperm.xlu0 %875, %v210
        %v877 = vpop.permute.xlu0 %876
        %879 = vset.pattern.permute.xlu0 2
        %880 = vperm.xlu0 %879, %v211
        %v881 = vpop.permute.xlu0 %880
        %883 = vset.pattern.permute.xlu0 2
        %884 = vperm.xlu0 %883, %v212
        %v885 = vpop.permute.xlu0 %884
        %887 = vset.pattern.permute.xlu0 2
        %888 = vperm.xlu0 %887, %v213
        %v889 = vpop.permute.xlu0 %888
        %891 = vset.pattern.permute.xlu0 2
        %892 = vperm.xlu0 %891, %v214
        %v893 = vpop.permute.xlu0 %892
        %895 = vset.pattern.permute.xlu0 2
        %896 = vperm.xlu0 %895, %v215
        %v897 = vpop.permute.xlu0 %896
        %899 = vset.pattern.permute.xlu0 2
        %900 = vperm.xlu0 %899, %v216
        %v901 = vpop.permute.xlu0 %900
        %903 = vset.pattern.permute.xlu0 2
        %904 = vperm.xlu0 %903, %v217
        %v905 = vpop.permute.xlu0 %904
        %907 = vset.pattern.permute.xlu0 2
        %908 = vperm.xlu0 %907, %v218
        %v909 = vpop.permute.xlu0 %908
        %911 = vset.pattern.permute.xlu0 2
        %912 = vperm.xlu0 %911, %v219
        %v913 = vpop.permute.xlu0 %912
        %915 = vset.pattern.permute.xlu0 2
        %916 = vperm.xlu0 %915, %v220
        %v917 = vpop.permute.xlu0 %916
        %919 = vset.pattern.permute.xlu0 2
        %920 = vperm.xlu0 %919, %v221
        %v921 = vpop.permute.xlu0 %920
        %923 = vset.pattern.permute.xlu0 2
        %924 = vperm.xlu0 %923, %v222
        %v925 = vpop.permute.xlu0 %924
        %927 = vset.pattern.permute.xlu0 2
        %928 = vperm.xlu0 %927, %v223
        %v929 = vpop.permute.xlu0 %928
        %931 = vset.pattern.permute.xlu0 2
        %932 = vperm.xlu0 %931, %v224
        %v933 = vpop.permute.xlu0 %932
        %935 = vset.pattern.permute.xlu0 2
        %936 = vperm.xlu0 %935, %v225
        %v937 = vpop.permute.xlu0 %936
        %939 = vset.pattern.permute.xlu0 2
        %940 = vperm.xlu0 %939, %v226
        %v941 = vpop.permute.xlu0 %940
        %943 = vset.pattern.permute.xlu0 2
        %944 = vperm.xlu0 %943, %v227
        %v945 = vpop.permute.xlu0 %944
        %947 = vset.pattern.permute.xlu0 2
        %948 = vperm.xlu0 %947, %v228
        %v949 = vpop.permute.xlu0 %948
        %v951 = vlaneseq
        %v952 = vshrl.u32 %v951, 7
        %v953 = vsub.s32 2, %v952
        %v954 = vrot.slane %v229, %v953
        %v955 = vlaneseq
        %v956 = vshrl.u32 %v955, 7
        %v957 = vsub.s32 6, %v956
        %v958 = vrot.slane %v229, %v957
        %v961 = vlaneseq
        %v962 = vshrl.u32 %v961, 7
        %v963 = vsub.s32 2, %v962
        %v964 = vrot.slane %v954, %v963
        %v965 = vlaneseq
        %v966 = vshrl.u32 %v965, 7
        %v967 = vsub.s32 2, %v966
        %v968 = vrot.slane %v958, %v967
        %v969 = vmul.f32 %v825, %v964
        %v970 = vmul.f32 %v825, %v968
        %v971 = vmul.f32 %v829, %v964
        %v972 = vmul.f32 %v829, %v968
        %v973 = vmul.f32 %v833, %v964
        %v974 = vmul.f32 %v833, %v968
        %v975 = vmul.f32 %v837, %v964
        %v976 = vmul.f32 %v837, %v968
        %v977 = vmul.f32 %v841, %v964
        %v978 = vmul.f32 %v841, %v968
        %v979 = vmul.f32 %v845, %v964
        %v980 = vmul.f32 %v845, %v968
        %v981 = vmul.f32 %v849, %v964
        %v982 = vmul.f32 %v849, %v968
        %v983 = vmul.f32 %v853, %v964
        %v984 = vmul.f32 %v853, %v968
        %v985 = vmul.f32 %v857, %v964
        %v986 = vmul.f32 %v857, %v968
        %v987 = vmul.f32 %v861, %v964
        %v988 = vmul.f32 %v861, %v968
        %v989 = vmul.f32 %v865, %v964
        %v990 = vmul.f32 %v865, %v968
        %v991 = vmul.f32 %v869, %v964
        %v992 = vmul.f32 %v869, %v968
        %v993 = vmul.f32 %v873, %v964
        %v994 = vmul.f32 %v873, %v968
        %v995 = vmul.f32 %v877, %v964
        %v996 = vmul.f32 %v877, %v968
        %v997 = vmul.f32 %v881, %v964
        %v998 = vmul.f32 %v881, %v968
        %v999 = vmul.f32 %v885, %v964
        %v1000 = vmul.f32 %v885, %v968
        %v1001 = vmul.f32 %v889, %v964
        %v1002 = vmul.f32 %v889, %v968
        %v1003 = vmul.f32 %v893, %v964
        %v1004 = vmul.f32 %v893, %v968
        %v1005 = vmul.f32 %v897, %v964
        %v1006 = vmul.f32 %v897, %v968
        %v1007 = vmul.f32 %v901, %v964
        %v1008 = vmul.f32 %v901, %v968
        %v1009 = vmul.f32 %v905, %v964
        %v1010 = vmul.f32 %v905, %v968
        %v1011 = vmul.f32 %v909, %v964
        %v1012 = vmul.f32 %v909, %v968
        %v1013 = vmul.f32 %v913, %v964
        %v1014 = vmul.f32 %v913, %v968
        %v1015 = vmul.f32 %v917, %v964
        %v1016 = vmul.f32 %v917, %v968
        %v1017 = vmul.f32 %v921, %v964
        %v1018 = vmul.f32 %v921, %v968
        %v1019 = vmul.f32 %v925, %v964
        %v1020 = vmul.f32 %v925, %v968
        %v1021 = vmul.f32 %v929, %v964
        %v1022 = vmul.f32 %v929, %v968
        %v1023 = vmul.f32 %v933, %v964
        %v1024 = vmul.f32 %v933, %v968
        %v1025 = vmul.f32 %v937, %v964
        %v1026 = vmul.f32 %v937, %v968
        %v1027 = vmul.f32 %v941, %v964
        %v1028 = vmul.f32 %v941, %v968
        %v1029 = vmul.f32 %v945, %v964
        %v1030 = vmul.f32 %v945, %v968
        %v1031 = vmul.f32 %v949, %v964
        %v1032 = vmul.f32 %v949, %v968
        %v1033 = vadd.f32 %v759, %v969
        %v1034 = vadd.f32 %v760, %v970
        %v1035 = vadd.f32 %v761, %v971
        %v1036 = vadd.f32 %v762, %v972
        %v1037 = vadd.f32 %v763, %v973
        %v1038 = vadd.f32 %v764, %v974
        %v1039 = vadd.f32 %v765, %v975
        %v1040 = vadd.f32 %v766, %v976
        %v1041 = vadd.f32 %v767, %v977
        %v1042 = vadd.f32 %v768, %v978
        %v1043 = vadd.f32 %v769, %v979
        %v1044 = vadd.f32 %v770, %v980
        %v1045 = vadd.f32 %v771, %v981
        %v1046 = vadd.f32 %v772, %v982
        %v1047 = vadd.f32 %v773, %v983
        %v1048 = vadd.f32 %v774, %v984
        %v1049 = vadd.f32 %v775, %v985
        %v1050 = vadd.f32 %v776, %v986
        %v1051 = vadd.f32 %v777, %v987
        %v1052 = vadd.f32 %v778, %v988
        %v1053 = vadd.f32 %v779, %v989
        %v1054 = vadd.f32 %v780, %v990
        %v1055 = vadd.f32 %v781, %v991
        %v1056 = vadd.f32 %v782, %v992
        %v1057 = vadd.f32 %v783, %v993
        %v1058 = vadd.f32 %v784, %v994
        %v1059 = vadd.f32 %v785, %v995
        %v1060 = vadd.f32 %v786, %v996
        %v1061 = vadd.f32 %v787, %v997
        %v1062 = vadd.f32 %v788, %v998
        %v1063 = vadd.f32 %v789, %v999
        %v1064 = vadd.f32 %v790, %v1000
        %v1065 = vadd.f32 %v791, %v1001
        %v1066 = vadd.f32 %v792, %v1002
        %v1067 = vadd.f32 %v793, %v1003
        %v1068 = vadd.f32 %v794, %v1004
        %v1069 = vadd.f32 %v795, %v1005
        %v1070 = vadd.f32 %v796, %v1006
        %v1071 = vadd.f32 %v797, %v1007
        %v1072 = vadd.f32 %v798, %v1008
        %v1073 = vadd.f32 %v799, %v1009
        %v1074 = vadd.f32 %v800, %v1010
        %v1075 = vadd.f32 %v801, %v1011
        %v1076 = vadd.f32 %v802, %v1012
        %v1077 = vadd.f32 %v803, %v1013
        %v1078 = vadd.f32 %v804, %v1014
        %v1079 = vadd.f32 %v805, %v1015
        %v1080 = vadd.f32 %v806, %v1016
        %v1081 = vadd.f32 %v807, %v1017
        %v1082 = vadd.f32 %v808, %v1018
        %v1083 = vadd.f32 %v809, %v1019
        %v1084 = vadd.f32 %v810, %v1020
        %v1085 = vadd.f32 %v811, %v1021
        %v1086 = vadd.f32 %v812, %v1022
        %v1087 = vadd.f32 %v813, %v1023
        %v1088 = vadd.f32 %v814, %v1024
        %v1089 = vadd.f32 %v815, %v1025
        %v1090 = vadd.f32 %v816, %v1026
        %v1091 = vadd.f32 %v817, %v1027
        %v1092 = vadd.f32 %v818, %v1028
        %v1093 = vadd.f32 %v819, %v1029
        %v1094 = vadd.f32 %v820, %v1030
        %v1095 = vadd.f32 %v821, %v1031
        %v1096 = vadd.f32 %v822, %v1032
        %v1097 = vadd.f32 %v1033, %v1034
        %1098 = vadd.xlane.f32.xlu0 %v1097
        %v1099 = vpop.xlane.xlu0 %1098
        %v1100 = vadd.f32 %v1035, %v1036
        %1101 = vadd.xlane.f32.xlu0 %v1100
        %v1102 = vpop.xlane.xlu0 %1101
        %v1103 = vadd.f32 %v1037, %v1038
        %1104 = vadd.xlane.f32.xlu0 %v1103
        %v1105 = vpop.xlane.xlu0 %1104
        %v1106 = vadd.f32 %v1039, %v1040
        %1107 = vadd.xlane.f32.xlu0 %v1106
        %v1108 = vpop.xlane.xlu0 %1107
        %v1109 = vadd.f32 %v1041, %v1042
        %1110 = vadd.xlane.f32.xlu0 %v1109
        %v1111 = vpop.xlane.xlu0 %1110
        %v1112 = vadd.f32 %v1043, %v1044
        %1113 = vadd.xlane.f32.xlu0 %v1112
        %v1114 = vpop.xlane.xlu0 %1113
        %v1115 = vadd.f32 %v1045, %v1046
        %1116 = vadd.xlane.f32.xlu0 %v1115
        %v1117 = vpop.xlane.xlu0 %1116
        %v1118 = vadd.f32 %v1047, %v1048
        %1119 = vadd.xlane.f32.xlu0 %v1118
        %v1120 = vpop.xlane.xlu0 %1119
        %v1121 = vadd.f32 %v1049, %v1050
        %1122 = vadd.xlane.f32.xlu0 %v1121
        %v1123 = vpop.xlane.xlu0 %1122
        %v1124 = vadd.f32 %v1051, %v1052
        %1125 = vadd.xlane.f32.xlu0 %v1124
        %v1126 = vpop.xlane.xlu0 %1125
        %v1127 = vadd.f32 %v1053, %v1054
        %1128 = vadd.xlane.f32.xlu0 %v1127
        %v1129 = vpop.xlane.xlu0 %1128
        %v1130 = vadd.f32 %v1055, %v1056
        %1131 = vadd.xlane.f32.xlu0 %v1130
        %v1132 = vpop.xlane.xlu0 %1131
        %v1133 = vadd.f32 %v1057, %v1058
        %1134 = vadd.xlane.f32.xlu0 %v1133
        %v1135 = vpop.xlane.xlu0 %1134
        %v1136 = vadd.f32 %v1059, %v1060
        %1137 = vadd.xlane.f32.xlu0 %v1136
        %v1138 = vpop.xlane.xlu0 %1137
        %v1139 = vadd.f32 %v1061, %v1062
        %1140 = vadd.xlane.f32.xlu0 %v1139
        %v1141 = vpop.xlane.xlu0 %1140
        %v1142 = vadd.f32 %v1063, %v1064
        %1143 = vadd.xlane.f32.xlu0 %v1142
        %v1144 = vpop.xlane.xlu0 %1143
        %v1145 = vadd.f32 %v1065, %v1066
        %1146 = vadd.xlane.f32.xlu0 %v1145
        %v1147 = vpop.xlane.xlu0 %1146
        %v1148 = vadd.f32 %v1067, %v1068
        %1149 = vadd.xlane.f32.xlu0 %v1148
        %v1150 = vpop.xlane.xlu0 %1149
        %v1151 = vadd.f32 %v1069, %v1070
        %1152 = vadd.xlane.f32.xlu0 %v1151
        %v1153 = vpop.xlane.xlu0 %1152
        %v1154 = vadd.f32 %v1071, %v1072
        %1155 = vadd.xlane.f32.xlu0 %v1154
        %v1156 = vpop.xlane.xlu0 %1155
        %v1157 = vadd.f32 %v1073, %v1074
        %1158 = vadd.xlane.f32.xlu0 %v1157
        %v1159 = vpop.xlane.xlu0 %1158
        %v1160 = vadd.f32 %v1075, %v1076
        %1161 = vadd.xlane.f32.xlu0 %v1160
        %v1162 = vpop.xlane.xlu0 %1161
        %v1163 = vadd.f32 %v1077, %v1078
        %1164 = vadd.xlane.f32.xlu0 %v1163
        %v1165 = vpop.xlane.xlu0 %1164
        %v1166 = vadd.f32 %v1079, %v1080
        %1167 = vadd.xlane.f32.xlu0 %v1166
        %v1168 = vpop.xlane.xlu0 %1167
        %v1169 = vadd.f32 %v1081, %v1082
        %1170 = vadd.xlane.f32.xlu0 %v1169
        %v1171 = vpop.xlane.xlu0 %1170
        %v1172 = vadd.f32 %v1083, %v1084
        %1173 = vadd.xlane.f32.xlu0 %v1172
        %v1174 = vpop.xlane.xlu0 %1173
        %v1175 = vadd.f32 %v1085, %v1086
        %1176 = vadd.xlane.f32.xlu0 %v1175
        %v1177 = vpop.xlane.xlu0 %1176
        %v1178 = vadd.f32 %v1087, %v1088
        %1179 = vadd.xlane.f32.xlu0 %v1178
        %v1180 = vpop.xlane.xlu0 %1179
        %v1181 = vadd.f32 %v1089, %v1090
        %1182 = vadd.xlane.f32.xlu0 %v1181
        %v1183 = vpop.xlane.xlu0 %1182
        %v1184 = vadd.f32 %v1091, %v1092
        %1185 = vadd.xlane.f32.xlu0 %v1184
        %v1186 = vpop.xlane.xlu0 %1185
        %v1187 = vadd.f32 %v1093, %v1094
        %1188 = vadd.xlane.f32.xlu0 %v1187
        %v1189 = vpop.xlane.xlu0 %1188
        %v1190 = vadd.f32 %v1095, %v1096
        %1191 = vadd.xlane.f32.xlu0 %v1190
        %v1192 = vpop.xlane.xlu0 %1191
        %v1193 = vrcp.pop 256.0
        %v1194 = vmul.f32 %v1099, %v1193
        %v1195 = vmul.f32 %v1102, %v1193
        %v1196 = vmul.f32 %v1105, %v1193
        %v1197 = vmul.f32 %v1108, %v1193
        %v1198 = vmul.f32 %v1111, %v1193
        %v1199 = vmul.f32 %v1114, %v1193
        %v1200 = vmul.f32 %v1117, %v1193
        %v1201 = vmul.f32 %v1120, %v1193
        %v1202 = vmul.f32 %v1123, %v1193
        %v1203 = vmul.f32 %v1126, %v1193
        %v1204 = vmul.f32 %v1129, %v1193
        %v1205 = vmul.f32 %v1132, %v1193
        %v1206 = vmul.f32 %v1135, %v1193
        %v1207 = vmul.f32 %v1138, %v1193
        %v1208 = vmul.f32 %v1141, %v1193
        %v1209 = vmul.f32 %v1144, %v1193
        %v1210 = vmul.f32 %v1147, %v1193
        %v1211 = vmul.f32 %v1150, %v1193
        %v1212 = vmul.f32 %v1153, %v1193
        %v1213 = vmul.f32 %v1156, %v1193
        %v1214 = vmul.f32 %v1159, %v1193
        %v1215 = vmul.f32 %v1162, %v1193
        %v1216 = vmul.f32 %v1165, %v1193
        %v1217 = vmul.f32 %v1168, %v1193
        %v1218 = vmul.f32 %v1171, %v1193
        %v1219 = vmul.f32 %v1174, %v1193
        %v1220 = vmul.f32 %v1177, %v1193
        %v1221 = vmul.f32 %v1180, %v1193
        %v1222 = vmul.f32 %v1183, %v1193
        %v1223 = vmul.f32 %v1186, %v1193
        %v1224 = vmul.f32 %v1189, %v1193
        %v1225 = vmul.f32 %v1192, %v1193
        %v1226 = vsub.f32 %v1033, %v1194
        %v1227 = vsub.f32 %v1034, %v1194
        %v1228 = vsub.f32 %v1035, %v1195
        %v1229 = vsub.f32 %v1036, %v1195
        %v1230 = vsub.f32 %v1037, %v1196
        %v1231 = vsub.f32 %v1038, %v1196
        %v1232 = vsub.f32 %v1039, %v1197
        %v1233 = vsub.f32 %v1040, %v1197
        %v1234 = vsub.f32 %v1041, %v1198
        %v1235 = vsub.f32 %v1042, %v1198
        %v1236 = vsub.f32 %v1043, %v1199
        %v1237 = vsub.f32 %v1044, %v1199
        %v1238 = vsub.f32 %v1045, %v1200
        %v1239 = vsub.f32 %v1046, %v1200
        %v1240 = vsub.f32 %v1047, %v1201
        %v1241 = vsub.f32 %v1048, %v1201
        %v1242 = vsub.f32 %v1049, %v1202
        %v1243 = vsub.f32 %v1050, %v1202
        %v1244 = vsub.f32 %v1051, %v1203
        %v1245 = vsub.f32 %v1052, %v1203
        %v1246 = vsub.f32 %v1053, %v1204
        %v1247 = vsub.f32 %v1054, %v1204
        %v1248 = vsub.f32 %v1055, %v1205
        %v1249 = vsub.f32 %v1056, %v1205
        %v1250 = vsub.f32 %v1057, %v1206
        %v1251 = vsub.f32 %v1058, %v1206
        %v1252 = vsub.f32 %v1059, %v1207
        %v1253 = vsub.f32 %v1060, %v1207
        %v1254 = vsub.f32 %v1061, %v1208
        %v1255 = vsub.f32 %v1062, %v1208
        %v1256 = vsub.f32 %v1063, %v1209
        %v1257 = vsub.f32 %v1064, %v1209
        %v1258 = vsub.f32 %v1065, %v1210
        %v1259 = vsub.f32 %v1066, %v1210
        %v1260 = vsub.f32 %v1067, %v1211
        %v1261 = vsub.f32 %v1068, %v1211
        %v1262 = vsub.f32 %v1069, %v1212
        %v1263 = vsub.f32 %v1070, %v1212
        %v1264 = vsub.f32 %v1071, %v1213
        %v1265 = vsub.f32 %v1072, %v1213
        %v1266 = vsub.f32 %v1073, %v1214
        %v1267 = vsub.f32 %v1074, %v1214
        %v1268 = vsub.f32 %v1075, %v1215
        %v1269 = vsub.f32 %v1076, %v1215
        %v1270 = vsub.f32 %v1077, %v1216
        %v1271 = vsub.f32 %v1078, %v1216
        %v1272 = vsub.f32 %v1079, %v1217
        %v1273 = vsub.f32 %v1080, %v1217
        %v1274 = vsub.f32 %v1081, %v1218
        %v1275 = vsub.f32 %v1082, %v1218
        %v1276 = vsub.f32 %v1083, %v1219
        %v1277 = vsub.f32 %v1084, %v1219
        %v1278 = vsub.f32 %v1085, %v1220
        %v1279 = vsub.f32 %v1086, %v1220
        %v1280 = vsub.f32 %v1087, %v1221
        %v1281 = vsub.f32 %v1088, %v1221
        %v1282 = vsub.f32 %v1089, %v1222
        %v1283 = vsub.f32 %v1090, %v1222
        %v1284 = vsub.f32 %v1091, %v1223
        %v1285 = vsub.f32 %v1092, %v1223
        %v1286 = vsub.f32 %v1093, %v1224
        %v1287 = vsub.f32 %v1094, %v1224
        %v1288 = vsub.f32 %v1095, %v1225
        %v1289 = vsub.f32 %v1096, %v1225
        %v1290 = vmul.f32 %v1226, %v1226
        %v1291 = vmul.f32 %v1227, %v1227
        %v1292 = vmul.f32 %v1228, %v1228
        %v1293 = vmul.f32 %v1229, %v1229
        %v1294 = vmul.f32 %v1230, %v1230
        %v1295 = vmul.f32 %v1231, %v1231
        %v1296 = vmul.f32 %v1232, %v1232
        %v1297 = vmul.f32 %v1233, %v1233
        %v1298 = vmul.f32 %v1234, %v1234
        %v1299 = vmul.f32 %v1235, %v1235
        %v1300 = vmul.f32 %v1236, %v1236
        %v1301 = vmul.f32 %v1237, %v1237
        %v1302 = vmul.f32 %v1238, %v1238
        %v1303 = vmul.f32 %v1239, %v1239
        %v1304 = vmul.f32 %v1240, %v1240
        %v1305 = vmul.f32 %v1241, %v1241
        %v1306 = vmul.f32 %v1242, %v1242
        %v1307 = vmul.f32 %v1243, %v1243
        %v1308 = vmul.f32 %v1244, %v1244
        %v1309 = vmul.f32 %v1245, %v1245
        %v1310 = vmul.f32 %v1246, %v1246
        %v1311 = vmul.f32 %v1247, %v1247
        %v1312 = vmul.f32 %v1248, %v1248
        %v1313 = vmul.f32 %v1249, %v1249
        %v1314 = vmul.f32 %v1250, %v1250
        %v1315 = vmul.f32 %v1251, %v1251
        %v1316 = vmul.f32 %v1252, %v1252
        %v1317 = vmul.f32 %v1253, %v1253
        %v1318 = vmul.f32 %v1254, %v1254
        %v1319 = vmul.f32 %v1255, %v1255
        %v1320 = vmul.f32 %v1256, %v1256
        %v1321 = vmul.f32 %v1257, %v1257
        %v1322 = vmul.f32 %v1258, %v1258
        %v1323 = vmul.f32 %v1259, %v1259
        %v1324 = vmul.f32 %v1260, %v1260
        %v1325 = vmul.f32 %v1261, %v1261
        %v1326 = vmul.f32 %v1262, %v1262
        %v1327 = vmul.f32 %v1263, %v1263
        %v1328 = vmul.f32 %v1264, %v1264
        %v1329 = vmul.f32 %v1265, %v1265
        %v1330 = vmul.f32 %v1266, %v1266
        %v1331 = vmul.f32 %v1267, %v1267
        %v1332 = vmul.f32 %v1268, %v1268
        %v1333 = vmul.f32 %v1269, %v1269
        %v1334 = vmul.f32 %v1270, %v1270
        %v1335 = vmul.f32 %v1271, %v1271
        %v1336 = vmul.f32 %v1272, %v1272
        %v1337 = vmul.f32 %v1273, %v1273
        %v1338 = vmul.f32 %v1274, %v1274
        %v1339 = vmul.f32 %v1275, %v1275
        %v1340 = vmul.f32 %v1276, %v1276
        %v1341 = vmul.f32 %v1277, %v1277
        %v1342 = vmul.f32 %v1278, %v1278
        %v1343 = vmul.f32 %v1279, %v1279
        %v1344 = vmul.f32 %v1280, %v1280
        %v1345 = vmul.f32 %v1281, %v1281
        %v1346 = vmul.f32 %v1282, %v1282
        %v1347 = vmul.f32 %v1283, %v1283
        %v1348 = vmul.f32 %v1284, %v1284
        %v1349 = vmul.f32 %v1285, %v1285
        %v1350 = vmul.f32 %v1286, %v1286
        %v1351 = vmul.f32 %v1287, %v1287
        %v1352 = vmul.f32 %v1288, %v1288
        %v1353 = vmul.f32 %v1289, %v1289
        %v1354 = vsub.f32 0.0, %v1290
        %v1355 = vsub.f32 0.0, %v1291
        %v1356 = vsub.f32 0.0, %v1292
        %v1357 = vsub.f32 0.0, %v1293
        %v1358 = vsub.f32 0.0, %v1294
        %v1359 = vsub.f32 0.0, %v1295
        %v1360 = vsub.f32 0.0, %v1296
        %v1361 = vsub.f32 0.0, %v1297
        %v1362 = vsub.f32 0.0, %v1298
        %v1363 = vsub.f32 0.0, %v1299
        %v1364 = vsub.f32 0.0, %v1300
        %v1365 = vsub.f32 0.0, %v1301
        %v1366 = vsub.f32 0.0, %v1302
        %v1367 = vsub.f32 0.0, %v1303
        %v1368 = vsub.f32 0.0, %v1304
        %v1369 = vsub.f32 0.0, %v1305
        %v1370 = vsub.f32 0.0, %v1306
        %v1371 = vsub.f32 0.0, %v1307
        %v1372 = vsub.f32 0.0, %v1308
        %v1373 = vsub.f32 0.0, %v1309
        %v1374 = vsub.f32 0.0, %v1310
        %v1375 = vsub.f32 0.0, %v1311
        %v1376 = vsub.f32 0.0, %v1312
        %v1377 = vsub.f32 0.0, %v1313
        %v1378 = vsub.f32 0.0, %v1314
        %v1379 = vsub.f32 0.0, %v1315
        %v1380 = vsub.f32 0.0, %v1316
        %v1381 = vsub.f32 0.0, %v1317
        %v1382 = vsub.f32 0.0, %v1318
        %v1383 = vsub.f32 0.0, %v1319
        %v1384 = vsub.f32 0.0, %v1320
        %v1385 = vsub.f32 0.0, %v1321
        %v1386 = vsub.f32 0.0, %v1322
        %v1387 = vsub.f32 0.0, %v1323
        %v1388 = vsub.f32 0.0, %v1324
        %v1389 = vsub.f32 0.0, %v1325
        %v1390 = vsub.f32 0.0, %v1326
        %v1391 = vsub.f32 0.0, %v1327
        %v1392 = vsub.f32 0.0, %v1328
        %v1393 = vsub.f32 0.0, %v1329
        %v1394 = vsub.f32 0.0, %v1330
        %v1395 = vsub.f32 0.0, %v1331
        %v1396 = vsub.f32 0.0, %v1332
        %v1397 = vsub.f32 0.0, %v1333
        %v1398 = vsub.f32 0.0, %v1334
        %v1399 = vsub.f32 0.0, %v1335
        %v1400 = vsub.f32 0.0, %v1336
        %v1401 = vsub.f32 0.0, %v1337
        %v1402 = vsub.f32 0.0, %v1338
        %v1403 = vsub.f32 0.0, %v1339
        %v1404 = vsub.f32 0.0, %v1340
        %v1405 = vsub.f32 0.0, %v1341
        %v1406 = vsub.f32 0.0, %v1342
        %v1407 = vsub.f32 0.0, %v1343
        %v1408 = vsub.f32 0.0, %v1344
        %v1409 = vsub.f32 0.0, %v1345
        %v1410 = vsub.f32 0.0, %v1346
        %v1411 = vsub.f32 0.0, %v1347
        %v1412 = vsub.f32 0.0, %v1348
        %v1413 = vsub.f32 0.0, %v1349
        %v1414 = vsub.f32 0.0, %v1350
        %v1415 = vsub.f32 0.0, %v1351
        %v1416 = vsub.f32 0.0, %v1352
        %v1417 = vsub.f32 0.0, %v1353
        %v1418 = vmul.f32 %v1354, 1.442695
        %v1419 = vpow.pop %v1418
        %v1420 = vmul.f32 %v1355, 1.442695
        %v1421 = vpow.pop %v1420
        %v1422 = vmul.f32 %v1356, 1.442695
        %v1423 = vpow.pop %v1422
        %v1424 = vmul.f32 %v1357, 1.442695
        %v1425 = vpow.pop %v1424
        %v1426 = vmul.f32 %v1358, 1.442695
        %v1427 = vpow.pop %v1426
        %v1428 = vmul.f32 %v1359, 1.442695
        %v1429 = vpow.pop %v1428
        %v1430 = vmul.f32 %v1360, 1.442695
        %v1431 = vpow.pop %v1430
        %v1432 = vmul.f32 %v1361, 1.442695
        %v1433 = vpow.pop %v1432
        %v1434 = vmul.f32 %v1362, 1.442695
        %v1435 = vpow.pop %v1434
        %v1436 = vmul.f32 %v1363, 1.442695
        %v1437 = vpow.pop %v1436
        %v1438 = vmul.f32 %v1364, 1.442695
        %v1439 = vpow.pop %v1438
        %v1440 = vmul.f32 %v1365, 1.442695
        %v1441 = vpow.pop %v1440
        %v1442 = vmul.f32 %v1366, 1.442695
        %v1443 = vpow.pop %v1442
        %v1444 = vmul.f32 %v1367, 1.442695
        %v1445 = vpow.pop %v1444
        %v1446 = vmul.f32 %v1368, 1.442695
        %v1447 = vpow.pop %v1446
        %v1448 = vmul.f32 %v1369, 1.442695
        %v1449 = vpow.pop %v1448
        %v1450 = vmul.f32 %v1370, 1.442695
        %v1451 = vpow.pop %v1450
        %v1452 = vmul.f32 %v1371, 1.442695
        %v1453 = vpow.pop %v1452
        %v1454 = vmul.f32 %v1372, 1.442695
        %v1455 = vpow.pop %v1454
        %v1456 = vmul.f32 %v1373, 1.442695
        %v1457 = vpow.pop %v1456
        %v1458 = vmul.f32 %v1374, 1.442695
        %v1459 = vpow.pop %v1458
        %v1460 = vmul.f32 %v1375, 1.442695
        %v1461 = vpow.pop %v1460
        %v1462 = vmul.f32 %v1376, 1.442695
        %v1463 = vpow.pop %v1462
        %v1464 = vmul.f32 %v1377, 1.442695
        %v1465 = vpow.pop %v1464
        %v1466 = vmul.f32 %v1378, 1.442695
        %v1467 = vpow.pop %v1466
        %v1468 = vmul.f32 %v1379, 1.442695
        %v1469 = vpow.pop %v1468
        %v1470 = vmul.f32 %v1380, 1.442695
        %v1471 = vpow.pop %v1470
        %v1472 = vmul.f32 %v1381, 1.442695
        %v1473 = vpow.pop %v1472
        %v1474 = vmul.f32 %v1382, 1.442695
        %v1475 = vpow.pop %v1474
        %v1476 = vmul.f32 %v1383, 1.442695
        %v1477 = vpow.pop %v1476
        %v1478 = vmul.f32 %v1384, 1.442695
        %v1479 = vpow.pop %v1478
        %v1480 = vmul.f32 %v1385, 1.442695
        %v1481 = vpow.pop %v1480
        %v1482 = vmul.f32 %v1386, 1.442695
        %v1483 = vpow.pop %v1482
        %v1484 = vmul.f32 %v1387, 1.442695
        %v1485 = vpow.pop %v1484
        %v1486 = vmul.f32 %v1388, 1.442695
        %v1487 = vpow.pop %v1486
        %v1488 = vmul.f32 %v1389, 1.442695
        %v1489 = vpow.pop %v1488
        %v1490 = vmul.f32 %v1390, 1.442695
        %v1491 = vpow.pop %v1490
        %v1492 = vmul.f32 %v1391, 1.442695
        %v1493 = vpow.pop %v1492
        %v1494 = vmul.f32 %v1392, 1.442695
        %v1495 = vpow.pop %v1494
        %v1496 = vmul.f32 %v1393, 1.442695
        %v1497 = vpow.pop %v1496
        %v1498 = vmul.f32 %v1394, 1.442695
        %v1499 = vpow.pop %v1498
        %v1500 = vmul.f32 %v1395, 1.442695
        %v1501 = vpow.pop %v1500
        %v1502 = vmul.f32 %v1396, 1.442695
        %v1503 = vpow.pop %v1502
        %v1504 = vmul.f32 %v1397, 1.442695
        %v1505 = vpow.pop %v1504
        %v1506 = vmul.f32 %v1398, 1.442695
        %v1507 = vpow.pop %v1506
        %v1508 = vmul.f32 %v1399, 1.442695
        %v1509 = vpow.pop %v1508
        %v1510 = vmul.f32 %v1400, 1.442695
        %v1511 = vpow.pop %v1510
        %v1512 = vmul.f32 %v1401, 1.442695
        %v1513 = vpow.pop %v1512
        %v1514 = vmul.f32 %v1402, 1.442695
        %v1515 = vpow.pop %v1514
        %v1516 = vmul.f32 %v1403, 1.442695
        %v1517 = vpow.pop %v1516
        %v1518 = vmul.f32 %v1404, 1.442695
        %v1519 = vpow.pop %v1518
        %v1520 = vmul.f32 %v1405, 1.442695
        %v1521 = vpow.pop %v1520
        %v1522 = vmul.f32 %v1406, 1.442695
        %v1523 = vpow.pop %v1522
        %v1524 = vmul.f32 %v1407, 1.442695
        %v1525 = vpow.pop %v1524
        %v1526 = vmul.f32 %v1408, 1.442695
        %v1527 = vpow.pop %v1526
        %v1528 = vmul.f32 %v1409, 1.442695
        %v1529 = vpow.pop %v1528
        %v1530 = vmul.f32 %v1410, 1.442695
        %v1531 = vpow.pop %v1530
        %v1532 = vmul.f32 %v1411, 1.442695
        %v1533 = vpow.pop %v1532
        %v1534 = vmul.f32 %v1412, 1.442695
        %v1535 = vpow.pop %v1534
        %v1536 = vmul.f32 %v1413, 1.442695
        %v1537 = vpow.pop %v1536
        %v1538 = vmul.f32 %v1414, 1.442695
        %v1539 = vpow.pop %v1538
        %v1540 = vmul.f32 %v1415, 1.442695
        %v1541 = vpow.pop %v1540
        %v1542 = vmul.f32 %v1416, 1.442695
        %v1543 = vpow.pop %v1542
        %v1544 = vmul.f32 %v1417, 1.442695
        %v1545 = vpow.pop %v1544
        %1546 = vst [vmem:[%s176] sm:$0xff] %v1419
        %1547 = vst [vmem:[%s176 + $0x8] sm:$0xff] %v1421
        %1548 = vst [vmem:[%s176 + $0x10] sm:$0xff] %v1423
        %1549 = vst [vmem:[%s176 + $0x18] sm:$0xff] %v1425
        %1550 = vst [vmem:[%s176 + $0x20] sm:$0xff] %v1427
        %1551 = vst [vmem:[%s176 + $0x28] sm:$0xff] %v1429
        %1552 = vst [vmem:[%s176 + $0x30] sm:$0xff] %v1431
        %1553 = vst [vmem:[%s176 + $0x38] sm:$0xff] %v1433
        %1554 = vst [vmem:[%s176 + $0x40] sm:$0xff] %v1435
        %1555 = vst [vmem:[%s176 + $0x48] sm:$0xff] %v1437
        %1556 = vst [vmem:[%s176 + $0x50] sm:$0xff] %v1439
        %1557 = vst [vmem:[%s176 + $0x58] sm:$0xff] %v1441
        %1558 = vst [vmem:[%s176 + $0x60] sm:$0xff] %v1443
        %1559 = vst [vmem:[%s176 + $0x68] sm:$0xff] %v1445
        %1560 = vst [vmem:[%s176 + $0x70] sm:$0xff] %v1447
        %1561 = vst [vmem:[%s176 + $0x78] sm:$0xff] %v1449
        %1562 = vst [vmem:[%s176 + $0x80] sm:$0xff] %v1451
        %1563 = vst [vmem:[%s176 + $0x88] sm:$0xff] %v1453
        %1564 = vst [vmem:[%s176 + $0x90] sm:$0xff] %v1455
        %1565 = vst [vmem:[%s176 + $0x98] sm:$0xff] %v1457
        %1566 = vst [vmem:[%s176 + $0xa0] sm:$0xff] %v1459
        %1567 = vst [vmem:[%s176 + $0xa8] sm:$0xff] %v1461
        %1568 = vst [vmem:[%s176 + $0xb0] sm:$0xff] %v1463
        %1569 = vst [vmem:[%s176 + $0xb8] sm:$0xff] %v1465
        %1570 = vst [vmem:[%s176 + $0xc0] sm:$0xff] %v1467
        %1571 = vst [vmem:[%s176 + $0xc8] sm:$0xff] %v1469
        %1572 = vst [vmem:[%s176 + $0xd0] sm:$0xff] %v1471
        %1573 = vst [vmem:[%s176 + $0xd8] sm:$0xff] %v1473
        %1574 = vst [vmem:[%s176 + $0xe0] sm:$0xff] %v1475
        %1575 = vst [vmem:[%s176 + $0xe8] sm:$0xff] %v1477
        %1576 = vst [vmem:[%s176 + $0xf0] sm:$0xff] %v1479
        %1577 = vst [vmem:[%s176 + $0xf8] sm:$0xff] %v1481
        %1578 = vst [vmem:[%s176 + $0x100] sm:$0xff] %v1483
        %1579 = vst [vmem:[%s176 + $0x108] sm:$0xff] %v1485
        %1580 = vst [vmem:[%s176 + $0x110] sm:$0xff] %v1487
        %1581 = vst [vmem:[%s176 + $0x118] sm:$0xff] %v1489
        %1582 = vst [vmem:[%s176 + $0x120] sm:$0xff] %v1491
        %1583 = vst [vmem:[%s176 + $0x128] sm:$0xff] %v1493
        %1584 = vst [vmem:[%s176 + $0x130] sm:$0xff] %v1495
        %1585 = vst [vmem:[%s176 + $0x138] sm:$0xff] %v1497
        %1586 = vst [vmem:[%s176 + $0x140] sm:$0xff] %v1499
        %1587 = vst [vmem:[%s176 + $0x148] sm:$0xff] %v1501
        %1588 = vst [vmem:[%s176 + $0x150] sm:$0xff] %v1503
        %1589 = vst [vmem:[%s176 + $0x158] sm:$0xff] %v1505
        %1590 = vst [vmem:[%s176 + $0x160] sm:$0xff] %v1507
        %1591 = vst [vmem:[%s176 + $0x168] sm:$0xff] %v1509
        %1592 = vst [vmem:[%s176 + $0x170] sm:$0xff] %v1511
        %1593 = vst [vmem:[%s176 + $0x178] sm:$0xff] %v1513
        %1594 = vst [vmem:[%s176 + $0x180] sm:$0xff] %v1515
        %1595 = vst [vmem:[%s176 + $0x188] sm:$0xff] %v1517
        %1596 = vst [vmem:[%s176 + $0x190] sm:$0xff] %v1519
        %1597 = vst [vmem:[%s176 + $0x198] sm:$0xff] %v1521
        %1598 = vst [vmem:[%s176 + $0x1a0] sm:$0xff] %v1523
        %1599 = vst [vmem:[%s176 + $0x1a8] sm:$0xff] %v1525
        %1600 = vst [vmem:[%s176 + $0x1b0] sm:$0xff] %v1527
        %1601 = vst [vmem:[%s176 + $0x1b8] sm:$0xff] %v1529
        %1602 = vst [vmem:[%s176 + $0x1c0] sm:$0xff] %v1531
        %1603 = vst [vmem:[%s176 + $0x1c8] sm:$0xff] %v1533
        %1604 = vst [vmem:[%s176 + $0x1d0] sm:$0xff] %v1535
        %1605 = vst [vmem:[%s176 + $0x1d8] sm:$0xff] %v1537
        %1606 = vst [vmem:[%s176 + $0x1e0] sm:$0xff] %v1539
        %1607 = vst [vmem:[%s176 + $0x1e8] sm:$0xff] %v1541
        %1608 = vst [vmem:[%s176 + $0x1f0] sm:$0xff] %v1543
        %1609 = vst [vmem:[%s176 + $0x1f8] sm:$0xff] %v1545
        %s1610 = sand.u32 %s93, 1
        %s1611 = scalar_lea.sflag [#allocation3], %s1610
        %s1612 = sand.u32 %s93, 1
        %s1613 = smul.addr %s1612, 512
        %s1614 = scalar_lea.vmem [#allocation2], %s1613
        // Predicated region
        $region33: #{tpu_custom_call.1} parent=31 // pred_check
          %p1615 = pneg %p103
        $region34: #{tpu_custom_call.1} parent=31 // pred_check_branch
          %1617 = sbr.rel (%p1615) target = $region36
        $region35: #{tpu_custom_call.1} parent=31 // pred_region
          %s1618 = smul.u32 32, %s17
          %s1619 = ssub.s32 125, %s1618
          %p1620 = scmp.lt.s32.totalorder %s1619, 32
          %s1621 = scalar_select %p1620, %s1619, 32
          %s1622 = smul.u32 128, %s1621
          %s1623 = smul.u32 %s1622, 2
          %s1625 = ssub.s32 8192, %s1623
          %1626 = vsyncadd %s1611, %s1625
          %p1627 = scmp.ne.s32.totalorder 0, %s1623
          %s1628 = smul.addr %s1618, 2
          %s1629 = smul.addr %s1628, 128
          %s1630 = scalar_lea.hbm %s3, %s1629
          %s1631 = smul.u32 16, %s1621
          %s1632 = sshll.u32 %s1614, 4
          %s1633 = int_to_ptr.vmem [resolvable:$true] %s1632
          %s1634 = sshll.u32 %s1631, 4
          %1638 = dma.vmem_to_hbm [thread:$0]  (%p1627), %s1633, %s1634, %s1630, %s1611, 256, 256, 16
        $region36: #{tpu_custom_call.1} parent=31 // pred_fallthru
          _
      $region32: #{tpu_custom_call.1} parent=5 // pred_fallthru
        _
      %p1639 = scmp.le.s32.totalorder 2, %s12
      // Predicated region
      $region37: #{tpu_custom_call.1} parent=5 // pred_check
        %p1640 = pneg %p1639
      $region38: #{tpu_custom_call.1} parent=5 // pred_check_branch
        %1642 = sbr.rel (%p1640) target = $region40
      $region39: #{tpu_custom_call.1} parent=5 // pred_region
        %s1643 = ssub.s32 %s12, 2
        // Predicated region
        $region41: #{tpu_custom_call.1} parent=39 // pred_check
          %p1644 = pneg %p109
        $region42: #{tpu_custom_call.1} parent=39 // pred_check_branch
          %1646 = sbr.rel (%p1644) target = $region44
        $region43: #{tpu_custom_call.1} parent=39 // pred_region
          %s1647 = sand.u32 %s94, 1
          %s1648 = scalar_lea.sflag [#allocation3], %s1647
          %s1649 = sand.u32 %s94, 1
          %s1650 = smul.addr %s1649, 512
          %s1651 = scalar_lea.vmem [#allocation2], %s1650
          %1652 = dma.done %s1648, 8192
        $region44: #{tpu_custom_call.1} parent=39 // pred_fallthru
          _
      $region40: #{tpu_custom_call.1} parent=5 // pred_fallthru
        _
    $region6: #{tpu_custom_call.1} parent=1 // loop_footer
      %s16 = sadd.s32 1, %s12
    $region7: #{tpu_custom_call.1} parent=1 // loop_footer_branch
      %11 = sbr.rel target = $region3
    $region8: #{tpu_custom_call.1} parent=1 // loop_exit
      _
    %1653 = vsyncpa [#allocation3], 1
    %s1654 = scalar_lea.sflag [#allocation3], 1
    %1655 = vsyncpa %s1654, 1

</llo_original>
